<compile_context>
chip_gen: v7x
topology: tpu7x:2x2x1
jax: 0.10.0
libtpu: 0.0.40
codegen_flags: <defaults>
</compile_context>

<pallas_src>
import functools

import jax
import jax.numpy as jnp
from jax import lax
from jax.experimental import pallas as pl
from jax.experimental.pallas import tpu as pltpu


def _slice_kernel(grid_ref, guide_ref, out_ref, wxy_ref, *, D, Hg, Wg, H, W):
    # grid_ref : (1, C*D, S)   S = Hg*Wg   (bilateral grid slab, per batch)
    # guide_ref: (1, 1, TP)                 (pixel tile of the guidemap)
    # out_ref  : (1, C, TP)
    # wxy_ref  : (S, TP) f32 VMEM scratch   (xy tent weights, reused across n)
    S = Hg * Wg
    C = out_ref.shape[1]
    TP = out_ref.shape[-1]
    p_tile = pl.program_id(0)
    n = pl.program_id(1)

    # ---- build the data/batch-independent xy tent-weight matrix once per tile
    @pl.when(n == 0)
    def _build_wxy():
        p0 = p_tile * TP
        lane = lax.broadcasted_iota(jnp.int32, (1, TP), 1)
        p_f = (p0 + lane).astype(jnp.float32)               # global pixel index
        # hg = p // W, wg = p % W  via float reciprocal (no int div/mod)
        hg = jnp.floor((p_f + 0.5) * (1.0 / W))
        wg = p_f - hg * W
        # fold normalize([-1,1]) + un-normalize (align_corners=False):
        #   ix = ((wg/(W-1)*2 - 1 + 1)*Wg - 1)/2 = wg * Wg/(W-1) - 0.5
        ix = wg * (Wg / (W - 1.0)) - 0.5                     # (1, TP)
        iy = hg * (Hg / (H - 1.0)) - 0.5

        s_idx = lax.broadcasted_iota(jnp.int32, (S, 1), 0).astype(jnp.float32)
        yi = jnp.floor((s_idx + 0.5) * (1.0 / Wg))           # (S, 1)
        xi = s_idx - yi * Wg
        tx = jnp.maximum(0.0, 1.0 - jnp.abs(ix - xi))        # (S, TP)
        ty = jnp.maximum(0.0, 1.0 - jnp.abs(iy - yi))
        wxy_ref[...] = tx * ty

    # ---- MXU: (C*D, S) @ (S, TP) -> (C*D, TP)
    b = jnp.dot(grid_ref[0].astype(jnp.float32), wxy_ref[...],
                preferred_element_type=jnp.float32)

    # ---- guide-dependent z tent combine on the VPU
    z = guide_ref[0].astype(jnp.float32)                     # (1, TP)
    iz = (z * D + (D - 1.0)) * 0.5                           # ((z+1)*D - 1)/2
    d_idx = lax.broadcasted_iota(jnp.int32, (D, 1), 0).astype(jnp.float32)
    tz = jnp.maximum(0.0, 1.0 - jnp.abs(iz - d_idx))         # (D, TP)
    out = jnp.sum(b.reshape(C, D, TP) * tz[None, :, :], axis=1)   # (C, TP)
    out_ref[0] = out.astype(out_ref.dtype)


def slice_op(bilateral_grid, guidemap, *, tp_max=2048):
    """bilateral_grid: (N, C, D, Hg, Wg); guidemap: (N, 1, H, W) -> (N, C, H, W)."""
    N, C, D, Hg, Wg = bilateral_grid.shape
    Ng, Cg, H, W = guidemap.shape
    assert Ng == N and Cg == 1
    # grid_sample normalization divides by (H-1)/(W-1): degenerate 1-pixel axes
    # are undefined in the original module as well.
    assert H > 1 and W > 1, "guidemap spatial dims must be > 1"

    S = Hg * Wg
    P = H * W

    # Pixel tile: multiple of 128, capped at tp_max; pad P up to a multiple.
    TP = min(tp_max, pl.cdiv(P, 128) * 128)
    num_p = pl.cdiv(P, TP)
    P_pad = num_p * TP

    grid_flat = bilateral_grid.reshape(N, C * D, S)
    guide_flat = guidemap.reshape(N, 1, P)
    if P_pad != P:
        guide_flat = jnp.pad(guide_flat, ((0, 0), (0, 0), (0, P_pad - P)))

    kernel = functools.partial(_slice_kernel, D=D, Hg=Hg, Wg=Wg, H=H, W=W)

    out = pl.pallas_call(
        kernel,
        out_shape=jax.ShapeDtypeStruct((N, C, P_pad), bilateral_grid.dtype),
        grid_spec=pltpu.PrefetchScalarGridSpec(
            num_scalar_prefetch=0,
            grid=(num_p, N),        # pixel tiles outer (parallel), batch inner
            in_specs=[
                # bilateral-grid slab: full (C*D, S) block, indexed by batch only
                pl.BlockSpec((1, C * D, S), lambda p, n: (n, 0, 0)),
                # guide: lane-dense pixel tile
                pl.BlockSpec((1, 1, TP), lambda p, n: (n, 0, p)),
            ],
            out_specs=pl.BlockSpec((1, C, TP), lambda p, n: (n, 0, p)),
            scratch_shapes=[pltpu.VMEM((S, TP), jnp.float32)],
        ),
        compiler_params=pltpu.CompilerParams(
            # p-tile axis parallel (megacore on v7x); n must stay sequential so
            # the Wxy scratch built at n==0 is valid for n>0.
            dimension_semantics=("parallel", "arbitrary")),
    )(grid_flat, guide_flat)

    if P_pad != P:
        out = out[:, :, :P]
    return out.reshape(N, C, H, W)


def _reference(bilateral_grid, guidemap):
    """Independent gather-based trilinear grid_sample (zeros padding, align_corners=False)."""
    N, C, D, Hg, Wg = bilateral_grid.shape
    _, _, H, W = guidemap.shape
    hg = jnp.arange(H, dtype=jnp.float32)[:, None] / (H - 1) * 2 - 1   # (H,1)
    wg = jnp.arange(W, dtype=jnp.float32)[None, :] / (W - 1) * 2 - 1   # (1,W)
    x = jnp.broadcast_to(wg, (H, W))[None].repeat(N, 0)
    y = jnp.broadcast_to(hg, (H, W))[None].repeat(N, 0)
    z = guidemap[:, 0]                                                  # (N,H,W)

    ix = ((x + 1) * Wg - 1) / 2
    iy = ((y + 1) * Hg - 1) / 2
    iz = ((z + 1) * D - 1) / 2

    def corner(i):
        i0 = jnp.floor(i)
        return i0, i - i0

    x0, fx = corner(ix)
    y0, fy = corner(iy)
    z0, fz = corner(iz)

    out = jnp.zeros((N, C, H, W), jnp.float32)
    for dz in (0, 1):
        for dy in (0, 1):
            for dx in (0, 1):
                xs = x0 + dx
                ys = y0 + dy
                zs = z0 + dz
                w = (jnp.where(dx, fx, 1 - fx) *
                     jnp.where(dy, fy, 1 - fy) *
                     jnp.where(dz, fz, 1 - fz))
                valid = ((xs >= 0) & (xs < Wg) & (ys >= 0) & (ys < Hg) &
                         (zs >= 0) & (zs < D))
                xc = jnp.clip(xs, 0, Wg - 1).astype(jnp.int32)
                yc = jnp.clip(ys, 0, Hg - 1).astype(jnp.int32)
                zc = jnp.clip(zs, 0, D - 1).astype(jnp.int32)
                vals = bilateral_grid[jnp.arange(N)[:, None, None], :, zc, yc, xc]
                vals = jnp.moveaxis(vals, -1, 1)
                out = out + jnp.where(valid, w, 0.0)[:, None] * vals
    return out


if __name__ == "__main__":
    key = jax.random.PRNGKey(0)

    test_shapes = [
        # (N, C, D, Hg, Wg, H,  W)
        (2, 12, 8, 16, 16, 16, 16),   # toy shape (single pixel tile)
        (2, 12, 8, 16, 16, 64, 64),   # P > TP  -> multiple pixel tiles
        (1,  4, 8, 16, 16, 20, 24),   # P not a multiple of 128 -> padded tile
    ]

    for (N, C, D, Hg, Wg, H, W) in test_shapes:
        key, k1, k2 = jax.random.split(key, 3)
        bilateral_grid = jax.random.normal(k1, (N, C, D, Hg, Wg), dtype=jnp.float32)
        guidemap = jax.random.uniform(k2, (N, 1, H, W), dtype=jnp.float32)

        out = jax.block_until_ready(slice_op(bilateral_grid, guidemap))
        ref = _reference(bilateral_grid, guidemap)

        assert out.shape == (N, C, H, W)
        assert jnp.allclose(out, ref, rtol=1e-4, atol=1e-4), \
            f"mismatch vs reference at H={H}, W={W}"

    print("KERNEL_OK")
</pallas_src>

<mosaic_0001>
module attributes {stable_mosaic.version = 11 : i64} {
  func.func @_slice_kernel(%arg0: i32, %arg1: i32, %arg2: memref<1x96x256xf32, #tpu.memory_space<vmem>>, %arg3: memref<1x1x256xf32, #tpu.memory_space<vmem>>, %arg4: memref<1x12x256xf32, #tpu.memory_space<vmem>>, %arg5: memref<256x256xf32, #tpu.memory_space<vmem>>) attributes {dimension_semantics = [#tpu.dimension_semantics<parallel>, #tpu.dimension_semantics<arbitrary>], iteration_bounds = array<i64: 1, 2>, scalar_prefetch = 0 : i64, scratch_operands = 1 : i64, tpu.core_type = #tpu.core_type<tc>, window_params = [{transform_indices = @transform_0, window_bounds = array<i64: 1, 96, 256>}, {transform_indices = @transform_1, window_bounds = array<i64: 1, 1, 256>}, {transform_indices = @transform_2, window_bounds = array<i64: 1, 12, 256>}]} {
    %c0_i32 = arith.constant 0 : i32
    %0 = arith.cmpi eq, %arg1, %c0_i32 : i32
    %1 = arith.extui %0 : i1 to i32
    %c0_i32_0 = arith.constant 0 : i32
    %2 = arith.cmpi ne, %1, %c0_i32_0 : i32
    scf.if %2 {
      %c256_i32 = arith.constant 256 : i32
      %33 = arith.muli %arg0, %c256_i32 : i32
      %34 = tpu.iota {dimensions = array<i32: 1>} : vector<1x256xi32>
      %35 = vector.broadcast %33 : i32 to vector<1x256xi32>
      %36 = arith.addi %35, %34 : vector<1x256xi32>
      %37 = arith.sitofp %36 : vector<1x256xi32> to vector<1x256xf32>
      %cst_17 = arith.constant 5.000000e-01 : f32
      %38 = vector.broadcast %cst_17 : f32 to vector<1x256xf32>
      %39 = arith.addf %37, %38 : vector<1x256xf32>
      %cst_18 = arith.constant 6.250000e-02 : f32
      %40 = vector.broadcast %cst_18 : f32 to vector<1x256xf32>
      %41 = arith.mulf %39, %40 : vector<1x256xf32>
      %42 = math.floor %41 : vector<1x256xf32>
      %cst_19 = arith.constant 1.600000e+01 : f32
      %43 = vector.broadcast %cst_19 : f32 to vector<1x256xf32>
      %44 = arith.mulf %42, %43 : vector<1x256xf32>
      %45 = arith.subf %37, %44 : vector<1x256xf32>
      %cst_20 = arith.constant 1.06666672 : f32
      %46 = vector.broadcast %cst_20 : f32 to vector<1x256xf32>
      %47 = arith.mulf %45, %46 : vector<1x256xf32>
      %cst_21 = arith.constant 5.000000e-01 : f32
      %48 = vector.broadcast %cst_21 : f32 to vector<1x256xf32>
      %49 = arith.subf %47, %48 : vector<1x256xf32>
      %cst_22 = arith.constant 1.06666672 : f32
      %50 = vector.broadcast %cst_22 : f32 to vector<1x256xf32>
      %51 = arith.mulf %42, %50 : vector<1x256xf32>
      %cst_23 = arith.constant 5.000000e-01 : f32
      %52 = vector.broadcast %cst_23 : f32 to vector<1x256xf32>
      %53 = arith.subf %51, %52 : vector<1x256xf32>
      %54 = tpu.iota {dimensions = array<i32: 0>} : vector<256x1xi32>
      %55 = arith.sitofp %54 : vector<256x1xi32> to vector<256x1xf32>
      %cst_24 = arith.constant 5.000000e-01 : f32
      %56 = vector.broadcast %cst_24 : f32 to vector<256x1xf32>
      %57 = arith.addf %55, %56 : vector<256x1xf32>
      %cst_25 = arith.constant 6.250000e-02 : f32
      %58 = vector.broadcast %cst_25 : f32 to vector<256x1xf32>
      %59 = arith.mulf %57, %58 : vector<256x1xf32>
      %60 = math.floor %59 : vector<256x1xf32>
      %cst_26 = arith.constant 1.600000e+01 : f32
      %61 = vector.broadcast %cst_26 : f32 to vector<256x1xf32>
      %62 = arith.mulf %60, %61 : vector<256x1xf32>
      %63 = arith.subf %55, %62 : vector<256x1xf32>
      %64 = vector.broadcast %49 : vector<1x256xf32> to vector<256x256xf32>
      %65 = vector.broadcast %63 : vector<256x1xf32> to vector<256x256xf32>
      %66 = arith.subf %64, %65 : vector<256x256xf32>
      %67 = math.absf %66 : vector<256x256xf32>
      %cst_27 = arith.constant 1.000000e+00 : f32
      %68 = vector.broadcast %cst_27 : f32 to vector<256x256xf32>
      %69 = arith.subf %68, %67 : vector<256x256xf32>
      %cst_28 = arith.constant 0.000000e+00 : f32
      %70 = vector.broadcast %cst_28 : f32 to vector<256x256xf32>
      %71 = arith.maximumf %70, %69 : vector<256x256xf32>
      %72 = vector.broadcast %53 : vector<1x256xf32> to vector<256x256xf32>
      %73 = vector.broadcast %60 : vector<256x1xf32> to vector<256x256xf32>
      %74 = arith.subf %72, %73 : vector<256x256xf32>
      %75 = math.absf %74 : vector<256x256xf32>
      %cst_29 = arith.constant 1.000000e+00 : f32
      %76 = vector.broadcast %cst_29 : f32 to vector<256x256xf32>
      %77 = arith.subf %76, %75 : vector<256x256xf32>
      %cst_30 = arith.constant 0.000000e+00 : f32
      %78 = vector.broadcast %cst_30 : f32 to vector<256x256xf32>
      %79 = arith.maximumf %78, %77 : vector<256x256xf32>
      %80 = arith.mulf %71, %79 : vector<256x256xf32>
      %c0_31 = arith.constant 0 : index
      %c0_32 = arith.constant 0 : index
      %81 = vector.load %arg5[%c0_31, %c0_32] : memref<256x256xf32, #tpu.memory_space<vmem>>, vector<256x256xf32>
      tpu.vector_store %arg5[%c0_31, %c0_32], %80 {strides = array<i32>} : memref<256x256xf32, #tpu.memory_space<vmem>>, vector<256x256xf32>,
    } else {
    }
    %c0 = arith.constant 0 : index
    %c0_1 = arith.constant 0 : index
    %c0_2 = arith.constant 0 : index
    %3 = vector.load %arg2[%c0, %c0_1, %c0_2] : memref<1x96x256xf32, #tpu.memory_space<vmem>>, vector<1x96x256xf32>
    %4 = vector.shape_cast %3 : vector<1x96x256xf32> to vector<96x256xf32>
    %c0_3 = arith.constant 0 : index
    %c0_4 = arith.constant 0 : index
    %5 = vector.load %arg5[%c0_3, %c0_4] : memref<256x256xf32, #tpu.memory_space<vmem>>, vector<256x256xf32>
    %cst = arith.constant dense<0.000000e+00> : vector<96x256xf32>
    %6 = tpu.matmul %4, %5, %cst {dimension_numbers = #tpu.dot_dimension_numbers<[1], [0], [0], [1], [0, 0, 1, 1], [], []>} : vector<96x256xf32>, vector<256x256xf32>, vector<96x256xf32> -> vector<96x256xf32>
    %c0_5 = arith.constant 0 : index
    %c0_6 = arith.constant 0 : index
    %c0_7 = arith.constant 0 : index
    %7 = vector.load %arg3[%c0_5, %c0_6, %c0_7] : memref<1x1x256xf32, #tpu.memory_space<vmem>>, vector<1x1x256xf32>
    %8 = vector.shape_cast %7 : vector<1x1x256xf32> to vector<1x256xf32>
    %cst_8 = arith.constant 8.000000e+00 : f32
    %9 = vector.broadcast %cst_8 : f32 to vector<1x256xf32>
    %10 = arith.mulf %8, %9 : vector<1x256xf32>
    %cst_9 = arith.constant 7.000000e+00 : f32
    %11 = vector.broadcast %cst_9 : f32 to vector<1x256xf32>
    %12 = arith.addf %10, %11 : vector<1x256xf32>
    %cst_10 = arith.constant 5.000000e-01 : f32
    %13 = vector.broadcast %cst_10 : f32 to vector<1x256xf32>
    %14 = arith.mulf %12, %13 : vector<1x256xf32>
    %15 = tpu.iota {dimensions = array<i32: 0>} : vector<8x1xi32>
    %16 = arith.sitofp %15 : vector<8x1xi32> to vector<8x1xf32>
    %17 = vector.broadcast %14 : vector<1x256xf32> to vector<8x256xf32>
    %18 = vector.broadcast %16 : vector<8x1xf32> to vector<8x256xf32>
    %19 = arith.subf %17, %18 : vector<8x256xf32>
    %20 = math.absf %19 : vector<8x256xf32>
    %cst_11 = arith.constant 1.000000e+00 : f32
    %21 = vector.broadcast %cst_11 : f32 to vector<8x256xf32>
    %22 = arith.subf %21, %20 : vector<8x256xf32>
    %cst_12 = arith.constant 0.000000e+00 : f32
    %23 = vector.broadcast %cst_12 : f32 to vector<8x256xf32>
    %24 = arith.maximumf %23, %22 : vector<8x256xf32>
    %25 = vector.shape_cast %6 : vector<96x256xf32> to vector<12x8x256xf32>
    %26 = vector.shape_cast %24 : vector<8x256xf32> to vector<1x8x256xf32>
    %27 = vector.broadcast %26 : vector<1x8x256xf32> to vector<12x8x256xf32>
    %28 = arith.mulf %25, %27 : vector<12x8x256xf32>
    %cst_13 = arith.constant dense<0.000000e+00> : vector<12x256xf32>
    %29 = vector.multi_reduction <add>, %28, %cst_13 [1] : vector<12x8x256xf32> to vector<12x256xf32>
    %c0_14 = arith.constant 0 : index
    %c0_15 = arith.constant 0 : index
    %c0_16 = arith.constant 0 : index
    %30 = vector.load %arg4[%c0_14, %c0_15, %c0_16] : memref<1x12x256xf32, #tpu.memory_space<vmem>>, vector<1x12x256xf32>
    %31 = vector.shape_cast %30 : vector<1x12x256xf32> to vector<12x256xf32>
    %32 = vector.shape_cast %29 : vector<12x256xf32> to vector<1x12x256xf32>
    tpu.vector_store %arg4[%c0_14, %c0_15, %c0_16], %32 {strides = array<i32>} : memref<1x12x256xf32, #tpu.memory_space<vmem>>, vector<1x12x256xf32>,
    return
  }
  func.func @transform_0(%arg0: i32, %arg1: i32) -> (i32, i32, i32) {
    %c0_i32 = arith.constant 0 : i32
    %c0_i32_0 = arith.constant 0 : i32
    %c0_i32_1 = arith.constant 0 : i32
    return %arg1, %c0_i32, %c0_i32_0 : i32, i32, i32
  }
  func.func @transform_1(%arg0: i32, %arg1: i32) -> (i32, i32, i32) {
    %c0_i32 = arith.constant 0 : i32
    %c0_i32_0 = arith.constant 0 : i32
    return %arg1, %c0_i32, %arg0 : i32, i32, i32
  }
  func.func @transform_2(%arg0: i32, %arg1: i32) -> (i32, i32, i32) {
    %c0_i32 = arith.constant 0 : i32
    %c0_i32_0 = arith.constant 0 : i32
    return %arg1, %c0_i32, %arg0 : i32, i32, i32
  }
}

</mosaic_0001>

<llo_original>
// kernel: tpu_custom_call.1
$region0: #{tpu_custom_call.1}
  #allocation0 [shape = 'u32[]', space=smem, size = 0x4, offset = 0x4, fixed_abs, tag = 'smem constant byte address 0x4 - core index']
  #allocation1 [shape = 'u32[144,128]{1,0:T(1,128)}', space=vmem, size = 0x12000, scoped, tag = 'internal scratch']
  #allocation2 [shape = 'f32[256,256]{1,0:T(8,128)}', space=vmem, size = 0x40000, scoped, tag = 'scratch operand']
  %s0 = inlined_call_operand.hbm [shape: f32[2,96,256], index: 0, kind: input, shape index: {}]
  %s1 = inlined_call_operand.hbm [shape: f32[2,1,256], index: 1, kind: input, shape index: {}]
  %s2 = inlined_call_operand.vmem [shape: f32[2,12,256], index: 2, kind: output, shape index: {}]
  %s3 = sld [smem:[#allocation0]]
  $region53: #{tpu_custom_call.1} parent=0
    _
  %s5 = ssub.s32 1, %s3
  %s6 = scalar_select 0, %s5, %s3
  $region1: #{tpu_custom_call.1} parent=0
    #allocation3 [shape = 'u8[196608]{0}', space=vmem, size = 0x30000, scoped, tag = 'input window, operand 0']
    #allocation4 [shape = 's32[2]{0}', space=sflag, size = 0x8, scoped, tag = 'scoped memory for tpu_custom_call.1']
    #allocation5 [shape = 'u8[2048]{0}', space=vmem, size = 0x800, scoped, tag = 'input window, operand 1']
    #allocation6 [shape = 's32[2]{0}', space=sflag, size = 0x8, scoped, tag = 'scoped memory for tpu_custom_call.1']
    %7 = vsyncpa [#allocation4], 0
    %s8 = scalar_lea.sflag [#allocation4], 1
    %9 = vsyncpa %s8, 0
    %10 = vsyncpa [#allocation6], 0
    %s11 = scalar_lea.sflag [#allocation6], 1
    %12 = vsyncpa %s11, 0
    loop: start=0, step=1, limit=4
    $region2: #{tpu_custom_call.1} parent=1 // loop_pre_header
      _
    $region3: #{tpu_custom_call.1} parent=1 // loop_header
      %s14 = sphi 0, %s18
      %p15 = scmp.ge.s32.totalorder %s14, 4
      %s21 = sphi 0, %s33
      %s22 = sphi 0, %s29
      %s23 = sphi 0, %s21
      %s24 = sphi 0, %s22
      %s25 = sphi 0, %s23
      %s26 = sphi 0, %s24
      %s36 = sphi 0, %s38
      %s39 = sphi 0, %s36
      %s40 = sphi 0, %s39
      %s56 = sphi 0, %s40
      %s64 = sphi 0, %s66
      %s67 = sphi 0, %s64
      %s68 = sphi 0, %s67
      %s84 = sphi 0, %s68
      %s92 = sphi 0, %s94
      %s95 = sphi 0, %s92
      %s96 = sphi 0, %s95
      %s112 = sphi 0, %s96
    $region4: #{tpu_custom_call.1} parent=1 // loop_header_branch
      %17 = sbr.rel (%p15) target = $region8
    $region5: #{tpu_custom_call.1} parent=1 // loop_body
      %s19 = ssub.s32 %s14, 1
      %s20 = ssub.s32 %s14, 2
      %s27 = sadd.s32 1, %s22
      %p28 = scmp.ge.s32.totalorder %s27, 2
      %s29 = scalar_select %p28, 0, %s27
      %s30 = sadd.s32 1, %s21
      %s31 = scalar_select %p28, %s30, %s21
      %p32 = scmp.ge.s32.totalorder %s31, 1
      %s33 = scalar_select %p32, 0, %s31
      %s34 = ssub.s32 %s22, %s29
      %p35 = scmp.eq.s32.totalorder %s34, 0
      %s37 = sadd.s32 %s36, 1
      %s38 = scalar_select %p35, %s36, %s37
      %p41 = pneg %p35
      %p42 = scmp.eq.s32.totalorder %s14, 1
      %p43 = por %p41, %p42
      %p44 = scmp.ne.s32.totalorder %s36, %s39
      %p45 = scmp.eq.s32.totalorder %s14, 0
      %p46 = por %p44, %p45
      %p47 = scmp.ne.s32.totalorder %s36, %s39
      %p48 = scmp.eq.s32.totalorder %s19, 1
      %p49 = por %p47, %p48
      %p50 = scmp.ne.s32.totalorder %s39, %s40
      %p51 = scmp.eq.s32.totalorder %s19, 0
      %p52 = por %p50, %p51
      %p53 = scmp.ne.s32.totalorder %s39, %s40
      %p54 = scmp.eq.s32.totalorder %s20, 1
      %p55 = por %p53, %p54
      %p57 = scmp.ne.s32.totalorder %s40, %s56
      %p58 = scmp.eq.s32.totalorder %s20, 0
      %p59 = por %p57, %p58
      %s60 = ssub.s32 %s22, %s29
      %s61 = ssub.s32 %s21, %s33
      %s62 = sor.u32 %s60, %s61
      %p63 = scmp.eq.s32.totalorder %s62, 0
      %s65 = sadd.s32 %s64, 1
      %s66 = scalar_select %p63, %s64, %s65
      %p69 = pneg %p63
      %p70 = scmp.eq.s32.totalorder %s14, 1
      %p71 = por %p69, %p70
      %p72 = scmp.ne.s32.totalorder %s64, %s67
      %p73 = scmp.eq.s32.totalorder %s14, 0
      %p74 = por %p72, %p73
      %p75 = scmp.ne.s32.totalorder %s64, %s67
      %p76 = scmp.eq.s32.totalorder %s19, 1
      %p77 = por %p75, %p76
      %p78 = scmp.ne.s32.totalorder %s67, %s68
      %p79 = scmp.eq.s32.totalorder %s19, 0
      %p80 = por %p78, %p79
      %p81 = scmp.ne.s32.totalorder %s67, %s68
      %p82 = scmp.eq.s32.totalorder %s20, 1
      %p83 = por %p81, %p82
      %p85 = scmp.ne.s32.totalorder %s68, %s84
      %p86 = scmp.eq.s32.totalorder %s20, 0
      %p87 = por %p85, %p86
      %s88 = ssub.s32 %s22, %s29
      %s89 = ssub.s32 %s21, %s33
      %s90 = sor.u32 %s88, %s89
      %p91 = scmp.eq.s32.totalorder %s90, 0
      %s93 = sadd.s32 %s92, 1
      %s94 = scalar_select %p91, %s92, %s93
      %p97 = pneg %p91
      %p98 = scmp.eq.s32.totalorder %s14, 1
      %p99 = por %p97, %p98
      %p100 = scmp.ne.s32.totalorder %s92, %s95
      %p101 = scmp.eq.s32.totalorder %s14, 0
      %p102 = por %p100, %p101
      %p103 = scmp.ne.s32.totalorder %s92, %s95
      %p104 = scmp.eq.s32.totalorder %s19, 1
      %p105 = por %p103, %p104
      %p106 = scmp.ne.s32.totalorder %s95, %s96
      %p107 = scmp.eq.s32.totalorder %s19, 0
      %p108 = por %p106, %p107
      %p109 = scmp.ne.s32.totalorder %s95, %s96
      %p110 = scmp.eq.s32.totalorder %s20, 1
      %p111 = por %p109, %p110
      %p113 = scmp.ne.s32.totalorder %s96, %s112
      %p114 = scmp.eq.s32.totalorder %s20, 0
      %p115 = por %p113, %p114
      %p116 = scmp.le.s32.totalorder 1, %s14
      %p117 = scmp.lt.s32.totalorder %s14, 3
      %p118 = pnand %p116, %p117
      %p119 = pneg %p118
      // Predicated region
      $region9: #{tpu_custom_call.1} parent=5 // pred_check
        _
      $region10: #{tpu_custom_call.1} parent=5 // pred_check_branch
        %121 = sbr.rel (%p118) target = $region12
      $region11: #{tpu_custom_call.1} parent=5 // pred_region
        %s122 = ssub.s32 %s14, 1
      $region12: #{tpu_custom_call.1} parent=5 // pred_fallthru
        _
      %p123 = scmp.lt.s32.totalorder %s14, 2
      // Predicated region
      $region13: #{tpu_custom_call.1} parent=5 // pred_check
        %p124 = pneg %p123
      $region14: #{tpu_custom_call.1} parent=5 // pred_check_branch
        %126 = sbr.rel (%p124) target = $region16
      $region15: #{tpu_custom_call.1} parent=5 // pred_region
        // Predicated region
        $region17: #{tpu_custom_call.1} parent=15 // pred_check
          %p127 = pneg %p46
        $region18: #{tpu_custom_call.1} parent=15 // pred_check_branch
          %129 = sbr.rel (%p127) target = $region20
        $region19: #{tpu_custom_call.1} parent=15 // pred_region
          %s130 = sand.u32 %s36, 1
          %s131 = scalar_lea.sflag [#allocation4], %s130
          %s132 = sand.u32 %s36, 1
          %s133 = smul.addr %s132, 192
          %s134 = scalar_lea.vmem [#allocation3], %s133
          %s136 = ssub.s32 3072, 3072
          %137 = vsyncadd %s131, %s136
          %s138 = smul.addr %s22, 24
          %s139 = smul.addr %s138, 128
          %s140 = scalar_lea.hbm %s0, %s139
          %s141 = sshll.u32 %s134, 4
          %s142 = int_to_ptr.vmem [resolvable:$true] %s141
          %147 = dma.hbm_to_vmem [thread:$0]  %s140, 3072, %s142, %s131, 256, 256, 16
        $region20: #{tpu_custom_call.1} parent=15 // pred_fallthru
          _
        // Predicated region
        $region21: #{tpu_custom_call.1} parent=15 // pred_check
          %p148 = pneg %p74
        $region22: #{tpu_custom_call.1} parent=15 // pred_check_branch
          %150 = sbr.rel (%p148) target = $region24
        $region23: #{tpu_custom_call.1} parent=15 // pred_region
          %s151 = sand.u32 %s64, 1
          %s152 = scalar_lea.sflag [#allocation6], %s151
          %s153 = sand.u32 %s64, 1
          %s154 = smul.addr %s153, 2
          %s155 = scalar_lea.vmem [#allocation5], %s154
          %s156 = smul.u32 2, %s21
          %s158 = ssub.s32 32, 32
          %159 = vsyncadd %s152, %s158
          %s160 = smul.addr %s22, 2
          %s161 = sadd.s32 %s156, %s160
          %s162 = smul.addr %s161, 16
          %s163 = scalar_lea.hbm %s1, %s162
          %s165 = sshll.u32 %s155, 4
          %s166 = int_to_ptr.vmem [resolvable:$true] %s165
          %168 = dma.hbm_to_vmem [thread:$0]  %s163, 32, %s166, %s152
        $region24: #{tpu_custom_call.1} parent=15 // pred_fallthru
          _
      $region16: #{tpu_custom_call.1} parent=5 // pred_fallthru
        _
      %p169 = scmp.le.s32.totalorder 1, %s14
      %p170 = scmp.lt.s32.totalorder %s14, 3
      %p171 = pnand %p169, %p170
      %p172 = pneg %p171
      // Predicated region
      $region25: #{tpu_custom_call.1} parent=5 // pred_check
        _
      $region26: #{tpu_custom_call.1} parent=5 // pred_check_branch
        %174 = sbr.rel (%p171) target = $region28
      $region27: #{tpu_custom_call.1} parent=5 // pred_region
        %s175 = ssub.s32 %s14, 1
        %s176 = sand.u32 %s39, 1
        %s177 = scalar_lea.sflag [#allocation4], %s176
        %s178 = sand.u32 %s39, 1
        %s179 = smul.addr %s178, 192
        %s180 = scalar_lea.vmem [#allocation3], %s179
        // Predicated region
        $region29: #{tpu_custom_call.1} parent=27 // pred_check
          %p181 = pneg %p52
        $region30: #{tpu_custom_call.1} parent=27 // pred_check_branch
          %183 = sbr.rel (%p181) target = $region32
        $region31: #{tpu_custom_call.1} parent=27 // pred_region
          %184 = dma.done %s177, 3072
        $region32: #{tpu_custom_call.1} parent=27 // pred_fallthru
          _
        %s185 = sand.u32 %s67, 1
        %s186 = scalar_lea.sflag [#allocation6], %s185
        %s187 = sand.u32 %s67, 1
        %s188 = smul.addr %s187, 2
        %s189 = scalar_lea.vmem [#allocation5], %s188
        // Predicated region
        $region33: #{tpu_custom_call.1} parent=27 // pred_check
          %p190 = pneg %p80
        $region34: #{tpu_custom_call.1} parent=27 // pred_check_branch
          %192 = sbr.rel (%p190) target = $region36
        $region35: #{tpu_custom_call.1} parent=27 // pred_region
          %193 = dma.done %s186, 32
        $region36: #{tpu_custom_call.1} parent=27 // pred_fallthru
          _
        %s194 = sand.u32 %s39, 1
        %s195 = scalar_lea.sflag [#allocation4], %s194
        %s196 = sand.u32 %s39, 1
        %s197 = smul.addr %s196, 192
        %s198 = scalar_lea.vmem [#allocation3], %s197
        %p199 = pneg %p52
        %p200 = pneg %p49
        %s201 = sand.u32 %s67, 1
        %s202 = scalar_lea.sflag [#allocation6], %s201
        %s203 = sand.u32 %s67, 1
        %s204 = smul.addr %s203, 2
        %s205 = scalar_lea.vmem [#allocation5], %s204
        %p206 = pneg %p80
        %p207 = pneg %p77
        %p208 = pneg %p108
        %p209 = pneg %p105
        %s210 = smul.u32 2, %s23
        %p211 = scmp.lt.s32.totalorder %s24, 1
        %s212 = scalar_select %p211, %s24, 1
        %p213 = scmp.lt.s32.totalorder %s210, 1
        %s214 = scalar_select %p213, %s210, 1
        %s215 = smul.addr %s212, 4
        %s216 = sadd.s32 %s214, %s215
        %s217 = smul.addr %s216, 8
        %s218 = scalar_lea.vmem %s2, %s217
        %s219 = smul.u32 2, %s23
        %s220 = smul.u32 2, %s23
        %p221 = scmp.lt.s32.totalorder %s24, 1
        %s222 = scalar_select %p221, %s24, 1
        %p223 = scmp.lt.s32.totalorder %s220, 1
        %s224 = scalar_select %p223, %s220, 1
        %s225 = smul.addr %s222, 4
        %s226 = sadd.s32 %s224, %s225
        %s227 = smul.addr %s226, 8
        %s228 = scalar_lea.vmem %s2, %s227
        %s229 = smul.u32 2, %s23
        %p230 = scmp.eq.s32.totalorder %s24, 0
        // Predicated region
        $region37: #{tpu_custom_call.1} parent=27 // pred_check
          %p231 = pneg %p230
        $region38: #{tpu_custom_call.1} parent=27 // pred_check_branch
          %233 = sbr.rel (%p231) target = $region40
        $region39: #{tpu_custom_call.1} parent=27 // pred_region
          %s234 = smul.u32 %s23, 256
          %v235 = vlaneseq
          %v236 = vand.u32 %v235, 127
          %v237 = vadd.s32 %v236, 128
          %v238 = vstv %s234
          %v239 = vadd.s32 %v238, %v236
          %v240 = vadd.s32 %v238, %v237
          %v241 = vcvt.s32.f32 %v239
          %v242 = vcvt.s32.f32 %v240
          %v243 = vadd.f32 %v241, 0.5
          %v244 = vadd.f32 %v242, 0.5
          %v245 = vmul.f32 %v243, 0.0625
          %v246 = vmul.f32 %v244, 0.0625
          %v247 = vfloor.f32 %v245
          %v248 = vfloor.f32 %v246
          %v249 = vmul.f32 %v247, 16.0
          %v250 = vmul.f32 %v248, 16.0
          %v251 = vsub.f32 %v241, %v249
          %v252 = vsub.f32 %v242, %v250
          %v253 = vmul.f32 %v251, 1.0666667
          %v254 = vmul.f32 %v252, 1.0666667
          %v255 = vsub.f32 %v253, 0.5
          %v256 = vsub.f32 %v254, 0.5
          %v257 = vmul.f32 %v247, 1.0666667
          %v258 = vmul.f32 %v248, 1.0666667
          %v259 = vsub.f32 %v257, 0.5
          %v260 = vsub.f32 %v258, 0.5
          %v261 = vlaneseq
          %v262 = vshrl.u32 %v261, 7
          %v263 = vadd.s32 %v262, 8
          %v264 = vadd.s32 %v262, 16
          %v265 = vadd.s32 %v262, 24
          %v266 = vadd.s32 %v262, 32
          %v267 = vadd.s32 %v262, 40
          %v268 = vadd.s32 %v262, 48
          %v269 = vadd.s32 %v262, 56
          %v270 = vadd.s32 %v262, 64
          %v271 = vadd.s32 %v262, 72
          %v272 = vadd.s32 %v262, 80
          %v273 = vadd.s32 %v262, 88
          %v274 = vadd.s32 %v262, 96
          %v275 = vadd.s32 %v262, 104
          %v276 = vadd.s32 %v262, 112
          %v277 = vadd.s32 %v262, 120
          %v278 = vadd.s32 %v262, 128
          %v279 = vadd.s32 %v262, 136
          %v280 = vadd.s32 %v262, 144
          %v281 = vadd.s32 %v262, 152
          %v282 = vadd.s32 %v262, 160
          %v283 = vadd.s32 %v262, 168
          %v284 = vadd.s32 %v262, 176
          %v285 = vadd.s32 %v262, 184
          %v286 = vadd.s32 %v262, 192
          %v287 = vadd.s32 %v262, 200
          %v288 = vadd.s32 %v262, 208
          %v289 = vadd.s32 %v262, 216
          %v290 = vadd.s32 %v262, 224
          %v291 = vadd.s32 %v262, 232
          %v292 = vadd.s32 %v262, 240
          %v293 = vadd.s32 %v262, 248
          %v294 = vcvt.s32.f32 %v262
          %v295 = vcvt.s32.f32 %v263
          %v296 = vcvt.s32.f32 %v264
          %v297 = vcvt.s32.f32 %v265
          %v298 = vcvt.s32.f32 %v266
          %v299 = vcvt.s32.f32 %v267
          %v300 = vcvt.s32.f32 %v268
          %v301 = vcvt.s32.f32 %v269
          %v302 = vcvt.s32.f32 %v270
          %v303 = vcvt.s32.f32 %v271
          %v304 = vcvt.s32.f32 %v272
          %v305 = vcvt.s32.f32 %v273
          %v306 = vcvt.s32.f32 %v274
          %v307 = vcvt.s32.f32 %v275
          %v308 = vcvt.s32.f32 %v276
          %v309 = vcvt.s32.f32 %v277
          %v310 = vcvt.s32.f32 %v278
          %v311 = vcvt.s32.f32 %v279
          %v312 = vcvt.s32.f32 %v280
          %v313 = vcvt.s32.f32 %v281
          %v314 = vcvt.s32.f32 %v282
          %v315 = vcvt.s32.f32 %v283
          %v316 = vcvt.s32.f32 %v284
          %v317 = vcvt.s32.f32 %v285
          %v318 = vcvt.s32.f32 %v286
          %v319 = vcvt.s32.f32 %v287
          %v320 = vcvt.s32.f32 %v288
          %v321 = vcvt.s32.f32 %v289
          %v322 = vcvt.s32.f32 %v290
          %v323 = vcvt.s32.f32 %v291
          %v324 = vcvt.s32.f32 %v292
          %v325 = vcvt.s32.f32 %v293
          %v326 = vadd.f32 %v294, 0.5
          %v327 = vadd.f32 %v295, 0.5
          %v328 = vadd.f32 %v296, 0.5
          %v329 = vadd.f32 %v297, 0.5
          %v330 = vadd.f32 %v298, 0.5
          %v331 = vadd.f32 %v299, 0.5
          %v332 = vadd.f32 %v300, 0.5
          %v333 = vadd.f32 %v301, 0.5
          %v334 = vadd.f32 %v302, 0.5
          %v335 = vadd.f32 %v303, 0.5
          %v336 = vadd.f32 %v304, 0.5
          %v337 = vadd.f32 %v305, 0.5
          %v338 = vadd.f32 %v306, 0.5
          %v339 = vadd.f32 %v307, 0.5
          %v340 = vadd.f32 %v308, 0.5
          %v341 = vadd.f32 %v309, 0.5
          %v342 = vadd.f32 %v310, 0.5
          %v343 = vadd.f32 %v311, 0.5
          %v344 = vadd.f32 %v312, 0.5
          %v345 = vadd.f32 %v313, 0.5
          %v346 = vadd.f32 %v314, 0.5
          %v347 = vadd.f32 %v315, 0.5
          %v348 = vadd.f32 %v316, 0.5
          %v349 = vadd.f32 %v317, 0.5
          %v350 = vadd.f32 %v318, 0.5
          %v351 = vadd.f32 %v319, 0.5
          %v352 = vadd.f32 %v320, 0.5
          %v353 = vadd.f32 %v321, 0.5
          %v354 = vadd.f32 %v322, 0.5
          %v355 = vadd.f32 %v323, 0.5
          %v356 = vadd.f32 %v324, 0.5
          %v357 = vadd.f32 %v325, 0.5
          %v358 = vmul.f32 %v326, 0.0625
          %v359 = vmul.f32 %v327, 0.0625
          %v360 = vmul.f32 %v328, 0.0625
          %v361 = vmul.f32 %v329, 0.0625
          %v362 = vmul.f32 %v330, 0.0625
          %v363 = vmul.f32 %v331, 0.0625
          %v364 = vmul.f32 %v332, 0.0625
          %v365 = vmul.f32 %v333, 0.0625
          %v366 = vmul.f32 %v334, 0.0625
          %v367 = vmul.f32 %v335, 0.0625
          %v368 = vmul.f32 %v336, 0.0625
          %v369 = vmul.f32 %v337, 0.0625
          %v370 = vmul.f32 %v338, 0.0625
          %v371 = vmul.f32 %v339, 0.0625
          %v372 = vmul.f32 %v340, 0.0625
          %v373 = vmul.f32 %v341, 0.0625
          %v374 = vmul.f32 %v342, 0.0625
          %v375 = vmul.f32 %v343, 0.0625
          %v376 = vmul.f32 %v344, 0.0625
          %v377 = vmul.f32 %v345, 0.0625
          %v378 = vmul.f32 %v346, 0.0625
          %v379 = vmul.f32 %v347, 0.0625
          %v380 = vmul.f32 %v348, 0.0625
          %v381 = vmul.f32 %v349, 0.0625
          %v382 = vmul.f32 %v350, 0.0625
          %v383 = vmul.f32 %v351, 0.0625
          %v384 = vmul.f32 %v352, 0.0625
          %v385 = vmul.f32 %v353, 0.0625
          %v386 = vmul.f32 %v354, 0.0625
          %v387 = vmul.f32 %v355, 0.0625
          %v388 = vmul.f32 %v356, 0.0625
          %v389 = vmul.f32 %v357, 0.0625
          %v390 = vfloor.f32 %v358
          %v391 = vfloor.f32 %v359
          %v392 = vfloor.f32 %v360
          %v393 = vfloor.f32 %v361
          %v394 = vfloor.f32 %v362
          %v395 = vfloor.f32 %v363
          %v396 = vfloor.f32 %v364
          %v397 = vfloor.f32 %v365
          %v398 = vfloor.f32 %v366
          %v399 = vfloor.f32 %v367
          %v400 = vfloor.f32 %v368
          %v401 = vfloor.f32 %v369
          %v402 = vfloor.f32 %v370
          %v403 = vfloor.f32 %v371
          %v404 = vfloor.f32 %v372
          %v405 = vfloor.f32 %v373
          %v406 = vfloor.f32 %v374
          %v407 = vfloor.f32 %v375
          %v408 = vfloor.f32 %v376
          %v409 = vfloor.f32 %v377
          %v410 = vfloor.f32 %v378
          %v411 = vfloor.f32 %v379
          %v412 = vfloor.f32 %v380
          %v413 = vfloor.f32 %v381
          %v414 = vfloor.f32 %v382
          %v415 = vfloor.f32 %v383
          %v416 = vfloor.f32 %v384
          %v417 = vfloor.f32 %v385
          %v418 = vfloor.f32 %v386
          %v419 = vfloor.f32 %v387
          %v420 = vfloor.f32 %v388
          %v421 = vfloor.f32 %v389
          %v422 = vmul.f32 %v390, 16.0
          %v423 = vmul.f32 %v391, 16.0
          %v424 = vmul.f32 %v392, 16.0
          %v425 = vmul.f32 %v393, 16.0
          %v426 = vmul.f32 %v394, 16.0
          %v427 = vmul.f32 %v395, 16.0
          %v428 = vmul.f32 %v396, 16.0
          %v429 = vmul.f32 %v397, 16.0
          %v430 = vmul.f32 %v398, 16.0
          %v431 = vmul.f32 %v399, 16.0
          %v432 = vmul.f32 %v400, 16.0
          %v433 = vmul.f32 %v401, 16.0
          %v434 = vmul.f32 %v402, 16.0
          %v435 = vmul.f32 %v403, 16.0
          %v436 = vmul.f32 %v404, 16.0
          %v437 = vmul.f32 %v405, 16.0
          %v438 = vmul.f32 %v406, 16.0
          %v439 = vmul.f32 %v407, 16.0
          %v440 = vmul.f32 %v408, 16.0
          %v441 = vmul.f32 %v409, 16.0
          %v442 = vmul.f32 %v410, 16.0
          %v443 = vmul.f32 %v411, 16.0
          %v444 = vmul.f32 %v412, 16.0
          %v445 = vmul.f32 %v413, 16.0
          %v446 = vmul.f32 %v414, 16.0
          %v447 = vmul.f32 %v415, 16.0
          %v448 = vmul.f32 %v416, 16.0
          %v449 = vmul.f32 %v417, 16.0
          %v450 = vmul.f32 %v418, 16.0
          %v451 = vmul.f32 %v419, 16.0
          %v452 = vmul.f32 %v420, 16.0
          %v453 = vmul.f32 %v421, 16.0
          %v454 = vsub.f32 %v294, %v422
          %v455 = vsub.f32 %v295, %v423
          %v456 = vsub.f32 %v296, %v424
          %v457 = vsub.f32 %v297, %v425
          %v458 = vsub.f32 %v298, %v426
          %v459 = vsub.f32 %v299, %v427
          %v460 = vsub.f32 %v300, %v428
          %v461 = vsub.f32 %v301, %v429
          %v462 = vsub.f32 %v302, %v430
          %v463 = vsub.f32 %v303, %v431
          %v464 = vsub.f32 %v304, %v432
          %v465 = vsub.f32 %v305, %v433
          %v466 = vsub.f32 %v306, %v434
          %v467 = vsub.f32 %v307, %v435
          %v468 = vsub.f32 %v308, %v436
          %v469 = vsub.f32 %v309, %v437
          %v470 = vsub.f32 %v310, %v438
          %v471 = vsub.f32 %v311, %v439
          %v472 = vsub.f32 %v312, %v440
          %v473 = vsub.f32 %v313, %v441
          %v474 = vsub.f32 %v314, %v442
          %v475 = vsub.f32 %v315, %v443
          %v476 = vsub.f32 %v316, %v444
          %v477 = vsub.f32 %v317, %v445
          %v478 = vsub.f32 %v318, %v446
          %v479 = vsub.f32 %v319, %v447
          %v480 = vsub.f32 %v320, %v448
          %v481 = vsub.f32 %v321, %v449
          %v482 = vsub.f32 %v322, %v450
          %v483 = vsub.f32 %v323, %v451
          %v484 = vsub.f32 %v324, %v452
          %v485 = vsub.f32 %v325, %v453
          %v486 = vsub.f32 %v255, %v454
          %v487 = vsub.f32 %v256, %v454
          %v488 = vsub.f32 %v255, %v455
          %v489 = vsub.f32 %v256, %v455
          %v490 = vsub.f32 %v255, %v456
          %v491 = vsub.f32 %v256, %v456
          %v492 = vsub.f32 %v255, %v457
          %v493 = vsub.f32 %v256, %v457
          %v494 = vsub.f32 %v255, %v458
          %v495 = vsub.f32 %v256, %v458
          %v496 = vsub.f32 %v255, %v459
          %v497 = vsub.f32 %v256, %v459
          %v498 = vsub.f32 %v255, %v460
          %v499 = vsub.f32 %v256, %v460
          %v500 = vsub.f32 %v255, %v461
          %v501 = vsub.f32 %v256, %v461
          %v502 = vsub.f32 %v255, %v462
          %v503 = vsub.f32 %v256, %v462
          %v504 = vsub.f32 %v255, %v463
          %v505 = vsub.f32 %v256, %v463
          %v506 = vsub.f32 %v255, %v464
          %v507 = vsub.f32 %v256, %v464
          %v508 = vsub.f32 %v255, %v465
          %v509 = vsub.f32 %v256, %v465
          %v510 = vsub.f32 %v255, %v466
          %v511 = vsub.f32 %v256, %v466
          %v512 = vsub.f32 %v255, %v467
          %v513 = vsub.f32 %v256, %v467
          %v514 = vsub.f32 %v255, %v468
          %v515 = vsub.f32 %v256, %v468
          %v516 = vsub.f32 %v255, %v469
          %v517 = vsub.f32 %v256, %v469
          %v518 = vsub.f32 %v255, %v470
          %v519 = vsub.f32 %v256, %v470
          %v520 = vsub.f32 %v255, %v471
          %v521 = vsub.f32 %v256, %v471
          %v522 = vsub.f32 %v255, %v472
          %v523 = vsub.f32 %v256, %v472
          %v524 = vsub.f32 %v255, %v473
          %v525 = vsub.f32 %v256, %v473
          %v526 = vsub.f32 %v255, %v474
          %v527 = vsub.f32 %v256, %v474
          %v528 = vsub.f32 %v255, %v475
          %v529 = vsub.f32 %v256, %v475
          %v530 = vsub.f32 %v255, %v476
          %v531 = vsub.f32 %v256, %v476
          %v532 = vsub.f32 %v255, %v477
          %v533 = vsub.f32 %v256, %v477
          %v534 = vsub.f32 %v255, %v478
          %v535 = vsub.f32 %v256, %v478
          %v536 = vsub.f32 %v255, %v479
          %v537 = vsub.f32 %v256, %v479
          %v538 = vsub.f32 %v255, %v480
          %v539 = vsub.f32 %v256, %v480
          %v540 = vsub.f32 %v255, %v481
          %v541 = vsub.f32 %v256, %v481
          %v542 = vsub.f32 %v255, %v482
          %v543 = vsub.f32 %v256, %v482
          %v544 = vsub.f32 %v255, %v483
          %v545 = vsub.f32 %v256, %v483
          %v546 = vsub.f32 %v255, %v484
          %v547 = vsub.f32 %v256, %v484
          %v548 = vsub.f32 %v255, %v485
          %v549 = vsub.f32 %v256, %v485
          %v550 = vand.u32 2147483647, %v486
          %v551 = vand.u32 2147483647, %v487
          %v552 = vand.u32 2147483647, %v488
          %v553 = vand.u32 2147483647, %v489
          %v554 = vand.u32 2147483647, %v490
          %v555 = vand.u32 2147483647, %v491
          %v556 = vand.u32 2147483647, %v492
          %v557 = vand.u32 2147483647, %v493
          %v558 = vand.u32 2147483647, %v494
          %v559 = vand.u32 2147483647, %v495
          %v560 = vand.u32 2147483647, %v496
          %v561 = vand.u32 2147483647, %v497
          %v562 = vand.u32 2147483647, %v498
          %v563 = vand.u32 2147483647, %v499
          %v564 = vand.u32 2147483647, %v500
          %v565 = vand.u32 2147483647, %v501
          %v566 = vand.u32 2147483647, %v502
          %v567 = vand.u32 2147483647, %v503
          %v568 = vand.u32 2147483647, %v504
          %v569 = vand.u32 2147483647, %v505
          %v570 = vand.u32 2147483647, %v506
          %v571 = vand.u32 2147483647, %v507
          %v572 = vand.u32 2147483647, %v508
          %v573 = vand.u32 2147483647, %v509
          %v574 = vand.u32 2147483647, %v510
          %v575 = vand.u32 2147483647, %v511
          %v576 = vand.u32 2147483647, %v512
          %v577 = vand.u32 2147483647, %v513
          %v578 = vand.u32 2147483647, %v514
          %v579 = vand.u32 2147483647, %v515
          %v580 = vand.u32 2147483647, %v516
          %v581 = vand.u32 2147483647, %v517
          %v582 = vand.u32 2147483647, %v518
          %v583 = vand.u32 2147483647, %v519
          %v584 = vand.u32 2147483647, %v520
          %v585 = vand.u32 2147483647, %v521
          %v586 = vand.u32 2147483647, %v522
          %v587 = vand.u32 2147483647, %v523
          %v588 = vand.u32 2147483647, %v524
          %v589 = vand.u32 2147483647, %v525
          %v590 = vand.u32 2147483647, %v526
          %v591 = vand.u32 2147483647, %v527
          %v592 = vand.u32 2147483647, %v528
          %v593 = vand.u32 2147483647, %v529
          %v594 = vand.u32 2147483647, %v530
          %v595 = vand.u32 2147483647, %v531
          %v596 = vand.u32 2147483647, %v532
          %v597 = vand.u32 2147483647, %v533
          %v598 = vand.u32 2147483647, %v534
          %v599 = vand.u32 2147483647, %v535
          %v600 = vand.u32 2147483647, %v536
          %v601 = vand.u32 2147483647, %v537
          %v602 = vand.u32 2147483647, %v538
          %v603 = vand.u32 2147483647, %v539
          %v604 = vand.u32 2147483647, %v540
          %v605 = vand.u32 2147483647, %v541
          %v606 = vand.u32 2147483647, %v542
          %v607 = vand.u32 2147483647, %v543
          %v608 = vand.u32 2147483647, %v544
          %v609 = vand.u32 2147483647, %v545
          %v610 = vand.u32 2147483647, %v546
          %v611 = vand.u32 2147483647, %v547
          %v612 = vand.u32 2147483647, %v548
          %v613 = vand.u32 2147483647, %v549
          %v614 = vsub.f32 1.0, %v550
          %v615 = vsub.f32 1.0, %v551
          %v616 = vsub.f32 1.0, %v552
          %v617 = vsub.f32 1.0, %v553
          %v618 = vsub.f32 1.0, %v554
          %v619 = vsub.f32 1.0, %v555
          %v620 = vsub.f32 1.0, %v556
          %v621 = vsub.f32 1.0, %v557
          %v622 = vsub.f32 1.0, %v558
          %v623 = vsub.f32 1.0, %v559
          %v624 = vsub.f32 1.0, %v560
          %v625 = vsub.f32 1.0, %v561
          %v626 = vsub.f32 1.0, %v562
          %v627 = vsub.f32 1.0, %v563
          %v628 = vsub.f32 1.0, %v564
          %v629 = vsub.f32 1.0, %v565
          %v630 = vsub.f32 1.0, %v566
          %v631 = vsub.f32 1.0, %v567
          %v632 = vsub.f32 1.0, %v568
          %v633 = vsub.f32 1.0, %v569
          %v634 = vsub.f32 1.0, %v570
          %v635 = vsub.f32 1.0, %v571
          %v636 = vsub.f32 1.0, %v572
          %v637 = vsub.f32 1.0, %v573
          %v638 = vsub.f32 1.0, %v574
          %v639 = vsub.f32 1.0, %v575
          %v640 = vsub.f32 1.0, %v576
          %v641 = vsub.f32 1.0, %v577
          %v642 = vsub.f32 1.0, %v578
          %v643 = vsub.f32 1.0, %v579
          %v644 = vsub.f32 1.0, %v580
          %v645 = vsub.f32 1.0, %v581
          %v646 = vsub.f32 1.0, %v582
          %v647 = vsub.f32 1.0, %v583
          %v648 = vsub.f32 1.0, %v584
          %v649 = vsub.f32 1.0, %v585
          %v650 = vsub.f32 1.0, %v586
          %v651 = vsub.f32 1.0, %v587
          %v652 = vsub.f32 1.0, %v588
          %v653 = vsub.f32 1.0, %v589
          %v654 = vsub.f32 1.0, %v590
          %v655 = vsub.f32 1.0, %v591
          %v656 = vsub.f32 1.0, %v592
          %v657 = vsub.f32 1.0, %v593
          %v658 = vsub.f32 1.0, %v594
          %v659 = vsub.f32 1.0, %v595
          %v660 = vsub.f32 1.0, %v596
          %v661 = vsub.f32 1.0, %v597
          %v662 = vsub.f32 1.0, %v598
          %v663 = vsub.f32 1.0, %v599
          %v664 = vsub.f32 1.0, %v600
          %v665 = vsub.f32 1.0, %v601
          %v666 = vsub.f32 1.0, %v602
          %v667 = vsub.f32 1.0, %v603
          %v668 = vsub.f32 1.0, %v604
          %v669 = vsub.f32 1.0, %v605
          %v670 = vsub.f32 1.0, %v606
          %v671 = vsub.f32 1.0, %v607
          %v672 = vsub.f32 1.0, %v608
          %v673 = vsub.f32 1.0, %v609
          %v674 = vsub.f32 1.0, %v610
          %v675 = vsub.f32 1.0, %v611
          %v676 = vsub.f32 1.0, %v612
          %v677 = vsub.f32 1.0, %v613
          %v678 = vmax.f32 %v614, 0.0
          %v679 = vmax.f32 %v615, 0.0
          %v680 = vmax.f32 %v616, 0.0
          %v681 = vmax.f32 %v617, 0.0
          %v682 = vmax.f32 %v618, 0.0
          %v683 = vmax.f32 %v619, 0.0
          %v684 = vmax.f32 %v620, 0.0
          %v685 = vmax.f32 %v621, 0.0
          %v686 = vmax.f32 %v622, 0.0
          %v687 = vmax.f32 %v623, 0.0
          %v688 = vmax.f32 %v624, 0.0
          %v689 = vmax.f32 %v625, 0.0
          %v690 = vmax.f32 %v626, 0.0
          %v691 = vmax.f32 %v627, 0.0
          %v692 = vmax.f32 %v628, 0.0
          %v693 = vmax.f32 %v629, 0.0
          %v694 = vmax.f32 %v630, 0.0
          %v695 = vmax.f32 %v631, 0.0
          %v696 = vmax.f32 %v632, 0.0
          %v697 = vmax.f32 %v633, 0.0
          %v698 = vmax.f32 %v634, 0.0
          %v699 = vmax.f32 %v635, 0.0
          %v700 = vmax.f32 %v636, 0.0
          %v701 = vmax.f32 %v637, 0.0
          %v702 = vmax.f32 %v638, 0.0
          %v703 = vmax.f32 %v639, 0.0
          %v704 = vmax.f32 %v640, 0.0
          %v705 = vmax.f32 %v641, 0.0
          %v706 = vmax.f32 %v642, 0.0
          %v707 = vmax.f32 %v643, 0.0
          %v708 = vmax.f32 %v644, 0.0
          %v709 = vmax.f32 %v645, 0.0
          %v710 = vmax.f32 %v646, 0.0
          %v711 = vmax.f32 %v647, 0.0
          %v712 = vmax.f32 %v648, 0.0
          %v713 = vmax.f32 %v649, 0.0
          %v714 = vmax.f32 %v650, 0.0
          %v715 = vmax.f32 %v651, 0.0
          %v716 = vmax.f32 %v652, 0.0
          %v717 = vmax.f32 %v653, 0.0
          %v718 = vmax.f32 %v654, 0.0
          %v719 = vmax.f32 %v655, 0.0
          %v720 = vmax.f32 %v656, 0.0
          %v721 = vmax.f32 %v657, 0.0
          %v722 = vmax.f32 %v658, 0.0
          %v723 = vmax.f32 %v659, 0.0
          %v724 = vmax.f32 %v660, 0.0
          %v725 = vmax.f32 %v661, 0.0
          %v726 = vmax.f32 %v662, 0.0
          %v727 = vmax.f32 %v663, 0.0
          %v728 = vmax.f32 %v664, 0.0
          %v729 = vmax.f32 %v665, 0.0
          %v730 = vmax.f32 %v666, 0.0
          %v731 = vmax.f32 %v667, 0.0
          %v732 = vmax.f32 %v668, 0.0
          %v733 = vmax.f32 %v669, 0.0
          %v734 = vmax.f32 %v670, 0.0
          %v735 = vmax.f32 %v671, 0.0
          %v736 = vmax.f32 %v672, 0.0
          %v737 = vmax.f32 %v673, 0.0
          %v738 = vmax.f32 %v674, 0.0
          %v739 = vmax.f32 %v675, 0.0
          %v740 = vmax.f32 %v676, 0.0
          %v741 = vmax.f32 %v677, 0.0
          %v742 = vsub.f32 %v259, %v390
          %v743 = vsub.f32 %v260, %v390
          %v744 = vsub.f32 %v259, %v391
          %v745 = vsub.f32 %v260, %v391
          %v746 = vsub.f32 %v259, %v392
          %v747 = vsub.f32 %v260, %v392
          %v748 = vsub.f32 %v259, %v393
          %v749 = vsub.f32 %v260, %v393
          %v750 = vsub.f32 %v259, %v394
          %v751 = vsub.f32 %v260, %v394
          %v752 = vsub.f32 %v259, %v395
          %v753 = vsub.f32 %v260, %v395
          %v754 = vsub.f32 %v259, %v396
          %v755 = vsub.f32 %v260, %v396
          %v756 = vsub.f32 %v259, %v397
          %v757 = vsub.f32 %v260, %v397
          %v758 = vsub.f32 %v259, %v398
          %v759 = vsub.f32 %v260, %v398
          %v760 = vsub.f32 %v259, %v399
          %v761 = vsub.f32 %v260, %v399
          %v762 = vsub.f32 %v259, %v400
          %v763 = vsub.f32 %v260, %v400
          %v764 = vsub.f32 %v259, %v401
          %v765 = vsub.f32 %v260, %v401
          %v766 = vsub.f32 %v259, %v402
          %v767 = vsub.f32 %v260, %v402
          %v768 = vsub.f32 %v259, %v403
          %v769 = vsub.f32 %v260, %v403
          %v770 = vsub.f32 %v259, %v404
          %v771 = vsub.f32 %v260, %v404
          %v772 = vsub.f32 %v259, %v405
          %v773 = vsub.f32 %v260, %v405
          %v774 = vsub.f32 %v259, %v406
          %v775 = vsub.f32 %v260, %v406
          %v776 = vsub.f32 %v259, %v407
          %v777 = vsub.f32 %v260, %v407
          %v778 = vsub.f32 %v259, %v408
          %v779 = vsub.f32 %v260, %v408
          %v780 = vsub.f32 %v259, %v409
          %v781 = vsub.f32 %v260, %v409
          %v782 = vsub.f32 %v259, %v410
          %v783 = vsub.f32 %v260, %v410
          %v784 = vsub.f32 %v259, %v411
          %v785 = vsub.f32 %v260, %v411
          %v786 = vsub.f32 %v259, %v412
          %v787 = vsub.f32 %v260, %v412
          %v788 = vsub.f32 %v259, %v413
          %v789 = vsub.f32 %v260, %v413
          %v790 = vsub.f32 %v259, %v414
          %v791 = vsub.f32 %v260, %v414
          %v792 = vsub.f32 %v259, %v415
          %v793 = vsub.f32 %v260, %v415
          %v794 = vsub.f32 %v259, %v416
          %v795 = vsub.f32 %v260, %v416
          %v796 = vsub.f32 %v259, %v417
          %v797 = vsub.f32 %v260, %v417
          %v798 = vsub.f32 %v259, %v418
          %v799 = vsub.f32 %v260, %v418
          %v800 = vsub.f32 %v259, %v419
          %v801 = vsub.f32 %v260, %v419
          %v802 = vsub.f32 %v259, %v420
          %v803 = vsub.f32 %v260, %v420
          %v804 = vsub.f32 %v259, %v421
          %v805 = vsub.f32 %v260, %v421
          %v806 = vand.u32 2147483647, %v742
          %v807 = vand.u32 2147483647, %v743
          %v808 = vand.u32 2147483647, %v744
          %v809 = vand.u32 2147483647, %v745
          %v810 = vand.u32 2147483647, %v746
          %v811 = vand.u32 2147483647, %v747
          %v812 = vand.u32 2147483647, %v748
          %v813 = vand.u32 2147483647, %v749
          %v814 = vand.u32 2147483647, %v750
          %v815 = vand.u32 2147483647, %v751
          %v816 = vand.u32 2147483647, %v752
          %v817 = vand.u32 2147483647, %v753
          %v818 = vand.u32 2147483647, %v754
          %v819 = vand.u32 2147483647, %v755
          %v820 = vand.u32 2147483647, %v756
          %v821 = vand.u32 2147483647, %v757
          %v822 = vand.u32 2147483647, %v758
          %v823 = vand.u32 2147483647, %v759
          %v824 = vand.u32 2147483647, %v760
          %v825 = vand.u32 2147483647, %v761
          %v826 = vand.u32 2147483647, %v762
          %v827 = vand.u32 2147483647, %v763
          %v828 = vand.u32 2147483647, %v764
          %v829 = vand.u32 2147483647, %v765
          %v830 = vand.u32 2147483647, %v766
          %v831 = vand.u32 2147483647, %v767
          %v832 = vand.u32 2147483647, %v768
          %v833 = vand.u32 2147483647, %v769
          %v834 = vand.u32 2147483647, %v770
          %v835 = vand.u32 2147483647, %v771
          %v836 = vand.u32 2147483647, %v772
          %v837 = vand.u32 2147483647, %v773
          %v838 = vand.u32 2147483647, %v774
          %v839 = vand.u32 2147483647, %v775
          %v840 = vand.u32 2147483647, %v776
          %v841 = vand.u32 2147483647, %v777
          %v842 = vand.u32 2147483647, %v778
          %v843 = vand.u32 2147483647, %v779
          %v844 = vand.u32 2147483647, %v780
          %v845 = vand.u32 2147483647, %v781
          %v846 = vand.u32 2147483647, %v782
          %v847 = vand.u32 2147483647, %v783
          %v848 = vand.u32 2147483647, %v784
          %v849 = vand.u32 2147483647, %v785
          %v850 = vand.u32 2147483647, %v786
          %v851 = vand.u32 2147483647, %v787
          %v852 = vand.u32 2147483647, %v788
          %v853 = vand.u32 2147483647, %v789
          %v854 = vand.u32 2147483647, %v790
          %v855 = vand.u32 2147483647, %v791
          %v856 = vand.u32 2147483647, %v792
          %v857 = vand.u32 2147483647, %v793
          %v858 = vand.u32 2147483647, %v794
          %v859 = vand.u32 2147483647, %v795
          %v860 = vand.u32 2147483647, %v796
          %v861 = vand.u32 2147483647, %v797
          %v862 = vand.u32 2147483647, %v798
          %v863 = vand.u32 2147483647, %v799
          %v864 = vand.u32 2147483647, %v800
          %v865 = vand.u32 2147483647, %v801
          %v866 = vand.u32 2147483647, %v802
          %v867 = vand.u32 2147483647, %v803
          %v868 = vand.u32 2147483647, %v804
          %v869 = vand.u32 2147483647, %v805
          %v870 = vsub.f32 1.0, %v806
          %v871 = vsub.f32 1.0, %v807
          %v872 = vsub.f32 1.0, %v808
          %v873 = vsub.f32 1.0, %v809
          %v874 = vsub.f32 1.0, %v810
          %v875 = vsub.f32 1.0, %v811
          %v876 = vsub.f32 1.0, %v812
          %v877 = vsub.f32 1.0, %v813
          %v878 = vsub.f32 1.0, %v814
          %v879 = vsub.f32 1.0, %v815
          %v880 = vsub.f32 1.0, %v816
          %v881 = vsub.f32 1.0, %v817
          %v882 = vsub.f32 1.0, %v818
          %v883 = vsub.f32 1.0, %v819
          %v884 = vsub.f32 1.0, %v820
          %v885 = vsub.f32 1.0, %v821
          %v886 = vsub.f32 1.0, %v822
          %v887 = vsub.f32 1.0, %v823
          %v888 = vsub.f32 1.0, %v824
          %v889 = vsub.f32 1.0, %v825
          %v890 = vsub.f32 1.0, %v826
          %v891 = vsub.f32 1.0, %v827
          %v892 = vsub.f32 1.0, %v828
          %v893 = vsub.f32 1.0, %v829
          %v894 = vsub.f32 1.0, %v830
          %v895 = vsub.f32 1.0, %v831
          %v896 = vsub.f32 1.0, %v832
          %v897 = vsub.f32 1.0, %v833
          %v898 = vsub.f32 1.0, %v834
          %v899 = vsub.f32 1.0, %v835
          %v900 = vsub.f32 1.0, %v836
          %v901 = vsub.f32 1.0, %v837
          %v902 = vsub.f32 1.0, %v838
          %v903 = vsub.f32 1.0, %v839
          %v904 = vsub.f32 1.0, %v840
          %v905 = vsub.f32 1.0, %v841
          %v906 = vsub.f32 1.0, %v842
          %v907 = vsub.f32 1.0, %v843
          %v908 = vsub.f32 1.0, %v844
          %v909 = vsub.f32 1.0, %v845
          %v910 = vsub.f32 1.0, %v846
          %v911 = vsub.f32 1.0, %v847
          %v912 = vsub.f32 1.0, %v848
          %v913 = vsub.f32 1.0, %v849
          %v914 = vsub.f32 1.0, %v850
          %v915 = vsub.f32 1.0, %v851
          %v916 = vsub.f32 1.0, %v852
          %v917 = vsub.f32 1.0, %v853
          %v918 = vsub.f32 1.0, %v854
          %v919 = vsub.f32 1.0, %v855
          %v920 = vsub.f32 1.0, %v856
          %v921 = vsub.f32 1.0, %v857
          %v922 = vsub.f32 1.0, %v858
          %v923 = vsub.f32 1.0, %v859
          %v924 = vsub.f32 1.0, %v860
          %v925 = vsub.f32 1.0, %v861
          %v926 = vsub.f32 1.0, %v862
          %v927 = vsub.f32 1.0, %v863
          %v928 = vsub.f32 1.0, %v864
          %v929 = vsub.f32 1.0, %v865
          %v930 = vsub.f32 1.0, %v866
          %v931 = vsub.f32 1.0, %v867
          %v932 = vsub.f32 1.0, %v868
          %v933 = vsub.f32 1.0, %v869
          %v934 = vmax.f32 %v870, 0.0
          %v935 = vmax.f32 %v871, 0.0
          %v936 = vmax.f32 %v872, 0.0
          %v937 = vmax.f32 %v873, 0.0
          %v938 = vmax.f32 %v874, 0.0
          %v939 = vmax.f32 %v875, 0.0
          %v940 = vmax.f32 %v876, 0.0
          %v941 = vmax.f32 %v877, 0.0
          %v942 = vmax.f32 %v878, 0.0
          %v943 = vmax.f32 %v879, 0.0
          %v944 = vmax.f32 %v880, 0.0
          %v945 = vmax.f32 %v881, 0.0
          %v946 = vmax.f32 %v882, 0.0
          %v947 = vmax.f32 %v883, 0.0
          %v948 = vmax.f32 %v884, 0.0
          %v949 = vmax.f32 %v885, 0.0
          %v950 = vmax.f32 %v886, 0.0
          %v951 = vmax.f32 %v887, 0.0
          %v952 = vmax.f32 %v888, 0.0
          %v953 = vmax.f32 %v889, 0.0
          %v954 = vmax.f32 %v890, 0.0
          %v955 = vmax.f32 %v891, 0.0
          %v956 = vmax.f32 %v892, 0.0
          %v957 = vmax.f32 %v893, 0.0
          %v958 = vmax.f32 %v894, 0.0
          %v959 = vmax.f32 %v895, 0.0
          %v960 = vmax.f32 %v896, 0.0
          %v961 = vmax.f32 %v897, 0.0
          %v962 = vmax.f32 %v898, 0.0
          %v963 = vmax.f32 %v899, 0.0
          %v964 = vmax.f32 %v900, 0.0
          %v965 = vmax.f32 %v901, 0.0
          %v966 = vmax.f32 %v902, 0.0
          %v967 = vmax.f32 %v903, 0.0
          %v968 = vmax.f32 %v904, 0.0
          %v969 = vmax.f32 %v905, 0.0
          %v970 = vmax.f32 %v906, 0.0
          %v971 = vmax.f32 %v907, 0.0
          %v972 = vmax.f32 %v908, 0.0
          %v973 = vmax.f32 %v909, 0.0
          %v974 = vmax.f32 %v910, 0.0
          %v975 = vmax.f32 %v911, 0.0
          %v976 = vmax.f32 %v912, 0.0
          %v977 = vmax.f32 %v913, 0.0
          %v978 = vmax.f32 %v914, 0.0
          %v979 = vmax.f32 %v915, 0.0
          %v980 = vmax.f32 %v916, 0.0
          %v981 = vmax.f32 %v917, 0.0
          %v982 = vmax.f32 %v918, 0.0
          %v983 = vmax.f32 %v919, 0.0
          %v984 = vmax.f32 %v920, 0.0
          %v985 = vmax.f32 %v921, 0.0
          %v986 = vmax.f32 %v922, 0.0
          %v987 = vmax.f32 %v923, 0.0
          %v988 = vmax.f32 %v924, 0.0
          %v989 = vmax.f32 %v925, 0.0
          %v990 = vmax.f32 %v926, 0.0
          %v991 = vmax.f32 %v927, 0.0
          %v992 = vmax.f32 %v928, 0.0
          %v993 = vmax.f32 %v929, 0.0
          %v994 = vmax.f32 %v930, 0.0
          %v995 = vmax.f32 %v931, 0.0
          %v996 = vmax.f32 %v932, 0.0
          %v997 = vmax.f32 %v933, 0.0
          %v998 = vmul.f32 %v678, %v934
          %v999 = vmul.f32 %v679, %v935
          %v1000 = vmul.f32 %v680, %v936
          %v1001 = vmul.f32 %v681, %v937
          %v1002 = vmul.f32 %v682, %v938
          %v1003 = vmul.f32 %v683, %v939
          %v1004 = vmul.f32 %v684, %v940
          %v1005 = vmul.f32 %v685, %v941
          %v1006 = vmul.f32 %v686, %v942
          %v1007 = vmul.f32 %v687, %v943
          %v1008 = vmul.f32 %v688, %v944
          %v1009 = vmul.f32 %v689, %v945
          %v1010 = vmul.f32 %v690, %v946
          %v1011 = vmul.f32 %v691, %v947
          %v1012 = vmul.f32 %v692, %v948
          %v1013 = vmul.f32 %v693, %v949
          %v1014 = vmul.f32 %v694, %v950
          %v1015 = vmul.f32 %v695, %v951
          %v1016 = vmul.f32 %v696, %v952
          %v1017 = vmul.f32 %v697, %v953
          %v1018 = vmul.f32 %v698, %v954
          %v1019 = vmul.f32 %v699, %v955
          %v1020 = vmul.f32 %v700, %v956
          %v1021 = vmul.f32 %v701, %v957
          %v1022 = vmul.f32 %v702, %v958
          %v1023 = vmul.f32 %v703, %v959
          %v1024 = vmul.f32 %v704, %v960
          %v1025 = vmul.f32 %v705, %v961
          %v1026 = vmul.f32 %v706, %v962
          %v1027 = vmul.f32 %v707, %v963
          %v1028 = vmul.f32 %v708, %v964
          %v1029 = vmul.f32 %v709, %v965
          %v1030 = vmul.f32 %v710, %v966
          %v1031 = vmul.f32 %v711, %v967
          %v1032 = vmul.f32 %v712, %v968
          %v1033 = vmul.f32 %v713, %v969
          %v1034 = vmul.f32 %v714, %v970
          %v1035 = vmul.f32 %v715, %v971
          %v1036 = vmul.f32 %v716, %v972
          %v1037 = vmul.f32 %v717, %v973
          %v1038 = vmul.f32 %v718, %v974
          %v1039 = vmul.f32 %v719, %v975
          %v1040 = vmul.f32 %v720, %v976
          %v1041 = vmul.f32 %v721, %v977
          %v1042 = vmul.f32 %v722, %v978
          %v1043 = vmul.f32 %v723, %v979
          %v1044 = vmul.f32 %v724, %v980
          %v1045 = vmul.f32 %v725, %v981
          %v1046 = vmul.f32 %v726, %v982
          %v1047 = vmul.f32 %v727, %v983
          %v1048 = vmul.f32 %v728, %v984
          %v1049 = vmul.f32 %v729, %v985
          %v1050 = vmul.f32 %v730, %v986
          %v1051 = vmul.f32 %v731, %v987
          %v1052 = vmul.f32 %v732, %v988
          %v1053 = vmul.f32 %v733, %v989
          %v1054 = vmul.f32 %v734, %v990
          %v1055 = vmul.f32 %v735, %v991
          %v1056 = vmul.f32 %v736, %v992
          %v1057 = vmul.f32 %v737, %v993
          %v1058 = vmul.f32 %v738, %v994
          %v1059 = vmul.f32 %v739, %v995
          %v1060 = vmul.f32 %v740, %v996
          %v1061 = vmul.f32 %v741, %v997
          %1062 = vst [vmem:[#allocation2] sm:$0xff] %v998
          %1063 = vst [vmem:[#allocation2 + $0x8] sm:$0xff] %v999
          %1064 = vst [vmem:[#allocation2 + $0x10] sm:$0xff] %v1000
          %1065 = vst [vmem:[#allocation2 + $0x18] sm:$0xff] %v1001
          %1066 = vst [vmem:[#allocation2 + $0x20] sm:$0xff] %v1002
          %1067 = vst [vmem:[#allocation2 + $0x28] sm:$0xff] %v1003
          %1068 = vst [vmem:[#allocation2 + $0x30] sm:$0xff] %v1004
          %1069 = vst [vmem:[#allocation2 + $0x38] sm:$0xff] %v1005
          %1070 = vst [vmem:[#allocation2 + $0x40] sm:$0xff] %v1006
          %1071 = vst [vmem:[#allocation2 + $0x48] sm:$0xff] %v1007
          %1072 = vst [vmem:[#allocation2 + $0x50] sm:$0xff] %v1008
          %1073 = vst [vmem:[#allocation2 + $0x58] sm:$0xff] %v1009
          %1074 = vst [vmem:[#allocation2 + $0x60] sm:$0xff] %v1010
          %1075 = vst [vmem:[#allocation2 + $0x68] sm:$0xff] %v1011
          %1076 = vst [vmem:[#allocation2 + $0x70] sm:$0xff] %v1012
          %1077 = vst [vmem:[#allocation2 + $0x78] sm:$0xff] %v1013
          %1078 = vst [vmem:[#allocation2 + $0x80] sm:$0xff] %v1014
          %1079 = vst [vmem:[#allocation2 + $0x88] sm:$0xff] %v1015
          %1080 = vst [vmem:[#allocation2 + $0x90] sm:$0xff] %v1016
          %1081 = vst [vmem:[#allocation2 + $0x98] sm:$0xff] %v1017
          %1082 = vst [vmem:[#allocation2 + $0xa0] sm:$0xff] %v1018
          %1083 = vst [vmem:[#allocation2 + $0xa8] sm:$0xff] %v1019
          %1084 = vst [vmem:[#allocation2 + $0xb0] sm:$0xff] %v1020
          %1085 = vst [vmem:[#allocation2 + $0xb8] sm:$0xff] %v1021
          %1086 = vst [vmem:[#allocation2 + $0xc0] sm:$0xff] %v1022
          %1087 = vst [vmem:[#allocation2 + $0xc8] sm:$0xff] %v1023
          %1088 = vst [vmem:[#allocation2 + $0xd0] sm:$0xff] %v1024
          %1089 = vst [vmem:[#allocation2 + $0xd8] sm:$0xff] %v1025
          %1090 = vst [vmem:[#allocation2 + $0xe0] sm:$0xff] %v1026
          %1091 = vst [vmem:[#allocation2 + $0xe8] sm:$0xff] %v1027
          %1092 = vst [vmem:[#allocation2 + $0xf0] sm:$0xff] %v1028
          %1093 = vst [vmem:[#allocation2 + $0xf8] sm:$0xff] %v1029
          %1094 = vst [vmem:[#allocation2 + $0x100] sm:$0xff] %v1030
          %1095 = vst [vmem:[#allocation2 + $0x108] sm:$0xff] %v1031
          %1096 = vst [vmem:[#allocation2 + $0x110] sm:$0xff] %v1032
          %1097 = vst [vmem:[#allocation2 + $0x118] sm:$0xff] %v1033
          %1098 = vst [vmem:[#allocation2 + $0x120] sm:$0xff] %v1034
          %1099 = vst [vmem:[#allocation2 + $0x128] sm:$0xff] %v1035
          %1100 = vst [vmem:[#allocation2 + $0x130] sm:$0xff] %v1036
          %1101 = vst [vmem:[#allocation2 + $0x138] sm:$0xff] %v1037
          %1102 = vst [vmem:[#allocation2 + $0x140] sm:$0xff] %v1038
          %1103 = vst [vmem:[#allocation2 + $0x148] sm:$0xff] %v1039
          %1104 = vst [vmem:[#allocation2 + $0x150] sm:$0xff] %v1040
          %1105 = vst [vmem:[#allocation2 + $0x158] sm:$0xff] %v1041
          %1106 = vst [vmem:[#allocation2 + $0x160] sm:$0xff] %v1042
          %1107 = vst [vmem:[#allocation2 + $0x168] sm:$0xff] %v1043
          %1108 = vst [vmem:[#allocation2 + $0x170] sm:$0xff] %v1044
          %1109 = vst [vmem:[#allocation2 + $0x178] sm:$0xff] %v1045
          %1110 = vst [vmem:[#allocation2 + $0x180] sm:$0xff] %v1046
          %1111 = vst [vmem:[#allocation2 + $0x188] sm:$0xff] %v1047
          %1112 = vst [vmem:[#allocation2 + $0x190] sm:$0xff] %v1048
          %1113 = vst [vmem:[#allocation2 + $0x198] sm:$0xff] %v1049
          %1114 = vst [vmem:[#allocation2 + $0x1a0] sm:$0xff] %v1050
          %1115 = vst [vmem:[#allocation2 + $0x1a8] sm:$0xff] %v1051
          %1116 = vst [vmem:[#allocation2 + $0x1b0] sm:$0xff] %v1052
          %1117 = vst [vmem:[#allocation2 + $0x1b8] sm:$0xff] %v1053
          %1118 = vst [vmem:[#allocation2 + $0x1c0] sm:$0xff] %v1054
          %1119 = vst [vmem:[#allocation2 + $0x1c8] sm:$0xff] %v1055
          %1120 = vst [vmem:[#allocation2 + $0x1d0] sm:$0xff] %v1056
          %1121 = vst [vmem:[#allocation2 + $0x1d8] sm:$0xff] %v1057
          %1122 = vst [vmem:[#allocation2 + $0x1e0] sm:$0xff] %v1058
          %1123 = vst [vmem:[#allocation2 + $0x1e8] sm:$0xff] %v1059
          %1124 = vst [vmem:[#allocation2 + $0x1f0] sm:$0xff] %v1060
          %1125 = vst [vmem:[#allocation2 + $0x1f8] sm:$0xff] %v1061
        $region40: #{tpu_custom_call.1} parent=27 // pred_fallthru
          _
        %v1126 = vld [vmem:[%s180] sm:$0xff]
        %v1127 = vld [vmem:[%s180 + $0x8] sm:$0xff]
        %v1128 = vld [vmem:[%s180 + $0x10] sm:$0xff]
        %v1129 = vld [vmem:[%s180 + $0x18] sm:$0xff]
        %v1130 = vld [vmem:[%s180 + $0x20] sm:$0xff]
        %v1131 = vld [vmem:[%s180 + $0x28] sm:$0xff]
        %v1132 = vld [vmem:[%s180 + $0x30] sm:$0xff]
        %v1133 = vld [vmem:[%s180 + $0x38] sm:$0xff]
        %v1134 = vld [vmem:[%s180 + $0x40] sm:$0xff]
        %v1135 = vld [vmem:[%s180 + $0x48] sm:$0xff]
        %v1136 = vld [vmem:[%s180 + $0x50] sm:$0xff]
        %v1137 = vld [vmem:[%s180 + $0x58] sm:$0xff]
        %v1138 = vld [vmem:[%s180 + $0x60] sm:$0xff]
        %v1139 = vld [vmem:[%s180 + $0x68] sm:$0xff]
        %v1140 = vld [vmem:[%s180 + $0x70] sm:$0xff]
        %v1141 = vld [vmem:[%s180 + $0x78] sm:$0xff]
        %v1142 = vld [vmem:[%s180 + $0x80] sm:$0xff]
        %v1143 = vld [vmem:[%s180 + $0x88] sm:$0xff]
        %v1144 = vld [vmem:[%s180 + $0x90] sm:$0xff]
        %v1145 = vld [vmem:[%s180 + $0x98] sm:$0xff]
        %v1146 = vld [vmem:[%s180 + $0xa0] sm:$0xff]
        %v1147 = vld [vmem:[%s180 + $0xa8] sm:$0xff]
        %v1148 = vld [vmem:[%s180 + $0xb0] sm:$0xff]
        %v1149 = vld [vmem:[%s180 + $0xb8] sm:$0xff]
        %v1150 = vld [vmem:[#allocation2] sm:$0xff]
        %v1151 = vld [vmem:[#allocation2 + $0x8] sm:$0xff]
        %v1152 = vld [vmem:[#allocation2 + $0x10] sm:$0xff]
        %v1153 = vld [vmem:[#allocation2 + $0x18] sm:$0xff]
        %v1154 = vld [vmem:[#allocation2 + $0x20] sm:$0xff]
        %v1155 = vld [vmem:[#allocation2 + $0x28] sm:$0xff]
        %v1156 = vld [vmem:[#allocation2 + $0x30] sm:$0xff]
        %v1157 = vld [vmem:[#allocation2 + $0x38] sm:$0xff]
        %v1158 = vld [vmem:[#allocation2 + $0x40] sm:$0xff]
        %v1159 = vld [vmem:[#allocation2 + $0x48] sm:$0xff]
        %v1160 = vld [vmem:[#allocation2 + $0x50] sm:$0xff]
        %v1161 = vld [vmem:[#allocation2 + $0x58] sm:$0xff]
        %v1162 = vld [vmem:[#allocation2 + $0x60] sm:$0xff]
        %v1163 = vld [vmem:[#allocation2 + $0x68] sm:$0xff]
        %v1164 = vld [vmem:[#allocation2 + $0x70] sm:$0xff]
        %v1165 = vld [vmem:[#allocation2 + $0x78] sm:$0xff]
        %v1166 = vld [vmem:[#allocation2 + $0x80] sm:$0xff]
        %v1167 = vld [vmem:[#allocation2 + $0x88] sm:$0xff]
        %v1168 = vld [vmem:[#allocation2 + $0x90] sm:$0xff]
        %v1169 = vld [vmem:[#allocation2 + $0x98] sm:$0xff]
        %v1170 = vld [vmem:[#allocation2 + $0xa0] sm:$0xff]
        %v1171 = vld [vmem:[#allocation2 + $0xa8] sm:$0xff]
        %v1172 = vld [vmem:[#allocation2 + $0xb0] sm:$0xff]
        %v1173 = vld [vmem:[#allocation2 + $0xb8] sm:$0xff]
        %v1174 = vld [vmem:[#allocation2 + $0xc0] sm:$0xff]
        %v1175 = vld [vmem:[#allocation2 + $0xc8] sm:$0xff]
        %v1176 = vld [vmem:[#allocation2 + $0xd0] sm:$0xff]
        %v1177 = vld [vmem:[#allocation2 + $0xd8] sm:$0xff]
        %v1178 = vld [vmem:[#allocation2 + $0xe0] sm:$0xff]
        %v1179 = vld [vmem:[#allocation2 + $0xe8] sm:$0xff]
        %v1180 = vld [vmem:[#allocation2 + $0xf0] sm:$0xff]
        %v1181 = vld [vmem:[#allocation2 + $0xf8] sm:$0xff]
        %v1182 = vld [vmem:[#allocation2 + $0x100] sm:$0xff]
        %v1183 = vld [vmem:[#allocation2 + $0x108] sm:$0xff]
        %v1184 = vld [vmem:[#allocation2 + $0x110] sm:$0xff]
        %v1185 = vld [vmem:[#allocation2 + $0x118] sm:$0xff]
        %v1186 = vld [vmem:[#allocation2 + $0x120] sm:$0xff]
        %v1187 = vld [vmem:[#allocation2 + $0x128] sm:$0xff]
        %v1188 = vld [vmem:[#allocation2 + $0x130] sm:$0xff]
        %v1189 = vld [vmem:[#allocation2 + $0x138] sm:$0xff]
        %v1190 = vld [vmem:[#allocation2 + $0x140] sm:$0xff]
        %v1191 = vld [vmem:[#allocation2 + $0x148] sm:$0xff]
        %v1192 = vld [vmem:[#allocation2 + $0x150] sm:$0xff]
        %v1193 = vld [vmem:[#allocation2 + $0x158] sm:$0xff]
        %v1194 = vld [vmem:[#allocation2 + $0x160] sm:$0xff]
        %v1195 = vld [vmem:[#allocation2 + $0x168] sm:$0xff]
        %v1196 = vld [vmem:[#allocation2 + $0x170] sm:$0xff]
        %v1197 = vld [vmem:[#allocation2 + $0x178] sm:$0xff]
        %v1198 = vld [vmem:[#allocation2 + $0x180] sm:$0xff]
        %v1199 = vld [vmem:[#allocation2 + $0x188] sm:$0xff]
        %v1200 = vld [vmem:[#allocation2 + $0x190] sm:$0xff]
        %v1201 = vld [vmem:[#allocation2 + $0x198] sm:$0xff]
        %v1202 = vld [vmem:[#allocation2 + $0x1a0] sm:$0xff]
        %v1203 = vld [vmem:[#allocation2 + $0x1a8] sm:$0xff]
        %v1204 = vld [vmem:[#allocation2 + $0x1b0] sm:$0xff]
        %v1205 = vld [vmem:[#allocation2 + $0x1b8] sm:$0xff]
        %v1206 = vld [vmem:[#allocation2 + $0x1c0] sm:$0xff]
        %v1207 = vld [vmem:[#allocation2 + $0x1c8] sm:$0xff]
        %v1208 = vld [vmem:[#allocation2 + $0x1d0] sm:$0xff]
        %v1209 = vld [vmem:[#allocation2 + $0x1d8] sm:$0xff]
        %v1210 = vld [vmem:[#allocation2 + $0x1e0] sm:$0xff]
        %v1211 = vld [vmem:[#allocation2 + $0x1e8] sm:$0xff]
        %v1212 = vld [vmem:[#allocation2 + $0x1f0] sm:$0xff]
        %v1213 = vld [vmem:[#allocation2 + $0x1f8] sm:$0xff]
        %1214 = vmatprep.subr.mxu0 %v1151
        %1215 = vmatpush1.msra.mxu0 %v1150
        %1216 = vmatprep.subr.mxu0 %v1153
        %1217 = vmatpush1.msra.mxu0 %v1152
        %1218 = vmatprep.subr.mxu0 %v1155
        %1219 = vmatpush1.msra.mxu0 %v1154
        %1220 = vmatprep.subr.mxu0 %v1157
        %1221 = vmatpush1.msra.mxu0 %v1156
        %1222 = vmatprep.subr.mxu0 %v1159
        %1223 = vmatpush1.msra.mxu0 %v1158
        %1224 = vmatprep.subr.mxu0 %v1161
        %1225 = vmatpush1.msra.mxu0 %v1160
        %1226 = vmatprep.subr.mxu0 %v1163
        %1227 = vmatpush1.msra.mxu0 %v1162
        %1228 = vmatprep.subr.mxu0 %v1165
        %1229 = vmatpush1.msra.mxu0 %v1164
        %1230 = vmatprep.subr.mxu0 %v1167
        %1231 = vmatpush1.msra.mxu0 %v1166
        %1232 = vmatprep.subr.mxu0 %v1169
        %1233 = vmatpush1.msra.mxu0 %v1168
        %1234 = vmatprep.subr.mxu0 %v1171
        %1235 = vmatpush1.msra.mxu0 %v1170
        %1236 = vmatprep.subr.mxu0 %v1173
        %1237 = vmatpush1.msra.mxu0 %v1172
        %1238 = vmatprep.subr.mxu0 %v1175
        %1239 = vmatpush1.msra.mxu0 %v1174
        %1240 = vmatprep.subr.mxu0 %v1177
        %1241 = vmatpush1.msra.mxu0 %v1176
        %1242 = vmatprep.subr.mxu0 %v1179
        %1243 = vmatpush1.msra.mxu0 %v1178
        %1244 = vmatprep.subr.mxu0 %v1181
        %1245 = vmatpush1.msra.mxu0 %v1180
        %1246 = vmatprep.subr.mxu0 %v1183
        %1247 = vmatpush1.msra.mxu0 %v1182
        %1248 = vmatprep.subr.mxu0 %v1185
        %1249 = vmatpush1.msra.mxu0 %v1184
        %1250 = vmatprep.subr.mxu0 %v1187
        %1251 = vmatpush1.msra.mxu0 %v1186
        %1252 = vmatprep.subr.mxu0 %v1189
        %1253 = vmatpush1.msra.mxu0 %v1188
        %1254 = vmatprep.subr.mxu0 %v1191
        %1255 = vmatpush1.msra.mxu0 %v1190
        %1256 = vmatprep.subr.mxu0 %v1193
        %1257 = vmatpush1.msra.mxu0 %v1192
        %1258 = vmatprep.subr.mxu0 %v1195
        %1259 = vmatpush1.msra.mxu0 %v1194
        %1260 = vmatprep.subr.mxu0 %v1197
        %1261 = vmatpush1.msra.mxu0 %v1196
        %1262 = vmatprep.subr.mxu0 %v1199
        %1263 = vmatpush1.msra.mxu0 %v1198
        %1264 = vmatprep.subr.mxu0 %v1201
        %1265 = vmatpush1.msra.mxu0 %v1200
        %1266 = vmatprep.subr.mxu0 %v1203
        %1267 = vmatpush1.msra.mxu0 %v1202
        %1268 = vmatprep.subr.mxu0 %v1205
        %1269 = vmatpush1.msra.mxu0 %v1204
        %1270 = vmatprep.subr.mxu0 %v1207
        %1271 = vmatpush1.msra.mxu0 %v1206
        %1272 = vmatprep.subr.mxu0 %v1209
        %1273 = vmatpush1.msra.mxu0 %v1208
        %1274 = vmatprep.subr.mxu0 %v1211
        %1275 = vmatpush1.msra.mxu0 %v1210
        %1276 = vmatprep.subr.mxu0 %v1213
        %1277 = vmatpush1.msra.mxu0 %v1212
        %1278 = vmatprep.mubr.f32.mxu0 %v1127
        %1279 = vmatmul.mubr.f32.gmra.mrb[0].mxu0 %v1126
        %v1280 = vpop.f32.mrb[0].mxu0
        %v1281 = vadd.f32 0.0, %v1280
        %v1282 = vpop.f32.mrb[0].mxu0
        %v1283 = vadd.f32 0.0, %v1282
        %1284 = vmatprep.mubr.f32.mxu0 %v1129
        %1285 = vmatmul.mubr.f32.gmra.mrb[0].mxu0 %v1128
        %v1286 = vpop.f32.mrb[0].mxu0
        %v1287 = vadd.f32 0.0, %v1286
        %v1288 = vpop.f32.mrb[0].mxu0
        %v1289 = vadd.f32 0.0, %v1288
        %1290 = vmatprep.mubr.f32.mxu0 %v1131
        %1291 = vmatmul.mubr.f32.gmra.mrb[0].mxu0 %v1130
        %v1292 = vpop.f32.mrb[0].mxu0
        %v1293 = vadd.f32 0.0, %v1292
        %v1294 = vpop.f32.mrb[0].mxu0
        %v1295 = vadd.f32 0.0, %v1294
        %1296 = vmatprep.mubr.f32.mxu0 %v1133
        %1297 = vmatmul.mubr.f32.gmra.mrb[0].mxu0 %v1132
        %v1298 = vpop.f32.mrb[0].mxu0
        %v1299 = vadd.f32 0.0, %v1298
        %v1300 = vpop.f32.mrb[0].mxu0
        %v1301 = vadd.f32 0.0, %v1300
        %1302 = vmatprep.mubr.f32.mxu0 %v1135
        %1303 = vmatmul.mubr.f32.gmra.mrb[0].mxu0 %v1134
        %v1304 = vpop.f32.mrb[0].mxu0
        %v1305 = vadd.f32 0.0, %v1304
        %v1306 = vpop.f32.mrb[0].mxu0
        %v1307 = vadd.f32 0.0, %v1306
        %1308 = vmatprep.mubr.f32.mxu0 %v1137
        %1309 = vmatmul.mubr.f32.gmra.mrb[0].mxu0 %v1136
        %v1310 = vpop.f32.mrb[0].mxu0
        %v1311 = vadd.f32 0.0, %v1310
        %v1312 = vpop.f32.mrb[0].mxu0
        %v1313 = vadd.f32 0.0, %v1312
        %1314 = vmatprep.mubr.f32.mxu0 %v1139
        %1315 = vmatmul.mubr.f32.gmra.mrb[0].mxu0 %v1138
        %v1316 = vpop.f32.mrb[0].mxu0
        %v1317 = vadd.f32 0.0, %v1316
        %v1318 = vpop.f32.mrb[0].mxu0
        %v1319 = vadd.f32 0.0, %v1318
        %1320 = vmatprep.mubr.f32.mxu0 %v1141
        %1321 = vmatmul.mubr.f32.gmra.mrb[0].mxu0 %v1140
        %v1322 = vpop.f32.mrb[0].mxu0
        %v1323 = vadd.f32 0.0, %v1322
        %v1324 = vpop.f32.mrb[0].mxu0
        %v1325 = vadd.f32 0.0, %v1324
        %1326 = vmatprep.mubr.f32.mxu0 %v1143
        %1327 = vmatmul.mubr.f32.gmra.mrb[0].mxu0 %v1142
        %v1328 = vpop.f32.mrb[0].mxu0
        %v1329 = vadd.f32 0.0, %v1328
        %v1330 = vpop.f32.mrb[0].mxu0
        %v1331 = vadd.f32 0.0, %v1330
        %1332 = vmatprep.mubr.f32.mxu0 %v1145
        %1333 = vmatmul.mubr.f32.gmra.mrb[0].mxu0 %v1144
        %v1334 = vpop.f32.mrb[0].mxu0
        %v1335 = vadd.f32 0.0, %v1334
        %v1336 = vpop.f32.mrb[0].mxu0
        %v1337 = vadd.f32 0.0, %v1336
        %1338 = vmatprep.mubr.f32.mxu0 %v1147
        %1339 = vmatmul.mubr.f32.gmra.mrb[0].mxu0 %v1146
        %v1340 = vpop.f32.mrb[0].mxu0
        %v1341 = vadd.f32 0.0, %v1340
        %v1342 = vpop.f32.mrb[0].mxu0
        %v1343 = vadd.f32 0.0, %v1342
        %1344 = vmatprep.mubr.f32.mxu0 %v1149
        %1345 = vmatmul.mubr.f32.gmra.mrb[0].mxu0 %v1148
        %v1346 = vpop.f32.mrb[0].mxu0
        %v1347 = vadd.f32 0.0, %v1346
        %v1348 = vpop.f32.mrb[0].mxu0
        %v1349 = vadd.f32 0.0, %v1348
        %1350 = vdwg.mxu0
        %v1351 = vld [vmem:[%s189] sm:$0x3]
        %v1352 = vmul.f32 %v1351, 8.0
        %v1353 = vadd.f32 %v1352, 7.0
        %v1354 = vmul.f32 %v1353, 0.5
        %v1355 = vlaneseq
        %v1356 = vshrl.u32 %v1355, 7
        %v1357 = vcvt.s32.f32 %v1356
        %v1359 = vlaneseq
        %v1360 = vshrl.u32 %v1359, 7
        %v1361 = vsub.s32 0, %v1360
        %v1362 = vrot.slane %v1354, %v1361
        %v1363 = vlaneseq
        %v1364 = vshrl.u32 %v1363, 7
        %v1365 = vsub.s32 1, %v1364
        %v1366 = vrot.slane %v1354, %v1365
        %v1369 = vsub.f32 %v1362, %v1357
        %v1370 = vsub.f32 %v1366, %v1357
        %v1371 = vand.u32 2147483647, %v1369
        %v1372 = vand.u32 2147483647, %v1370
        %v1373 = vsub.f32 1.0, %v1371
        %v1374 = vsub.f32 1.0, %v1372
        %v1375 = vmax.f32 %v1373, 0.0
        %v1376 = vmax.f32 %v1374, 0.0
        %v1377 = vmul.f32 %v1281, %v1375
        %v1378 = vmul.f32 %v1283, %v1376
        %v1379 = vmul.f32 %v1287, %v1375
        %v1380 = vmul.f32 %v1289, %v1376
        %v1381 = vmul.f32 %v1293, %v1375
        %v1382 = vmul.f32 %v1295, %v1376
        %v1383 = vmul.f32 %v1299, %v1375
        %v1384 = vmul.f32 %v1301, %v1376
        %v1385 = vmul.f32 %v1305, %v1375
        %v1386 = vmul.f32 %v1307, %v1376
        %v1387 = vmul.f32 %v1311, %v1375
        %v1388 = vmul.f32 %v1313, %v1376
        %v1389 = vmul.f32 %v1317, %v1375
        %v1390 = vmul.f32 %v1319, %v1376
        %v1391 = vmul.f32 %v1323, %v1375
        %v1392 = vmul.f32 %v1325, %v1376
        %v1393 = vmul.f32 %v1329, %v1375
        %v1394 = vmul.f32 %v1331, %v1376
        %v1395 = vmul.f32 %v1335, %v1375
        %v1396 = vmul.f32 %v1337, %v1376
        %v1397 = vmul.f32 %v1341, %v1375
        %v1398 = vmul.f32 %v1343, %v1376
        %v1399 = vmul.f32 %v1347, %v1375
        %v1400 = vmul.f32 %v1349, %v1376
        %v1401 = vrot.slane %v1377, 4
        %v1402 = vadd.f32 %v1377, %v1401
        %v1403 = vrot.slane %v1402, 2
        %v1404 = vadd.f32 %v1402, %v1403
        %v1405 = vrot.slane %v1404, 1
        %v1406 = vadd.f32 %v1404, %v1405
        %v1407 = vrot.slane %v1378, 4
        %v1408 = vadd.f32 %v1378, %v1407
        %v1409 = vrot.slane %v1408, 2
        %v1410 = vadd.f32 %v1408, %v1409
        %v1411 = vrot.slane %v1410, 1
        %v1412 = vadd.f32 %v1410, %v1411
        %v1413 = vrot.slane %v1379, 4
        %v1414 = vadd.f32 %v1379, %v1413
        %v1415 = vrot.slane %v1414, 2
        %v1416 = vadd.f32 %v1414, %v1415
        %v1417 = vrot.slane %v1416, 1
        %v1418 = vadd.f32 %v1416, %v1417
        %v1419 = vrot.slane %v1380, 4
        %v1420 = vadd.f32 %v1380, %v1419
        %v1421 = vrot.slane %v1420, 2
        %v1422 = vadd.f32 %v1420, %v1421
        %v1423 = vrot.slane %v1422, 1
        %v1424 = vadd.f32 %v1422, %v1423
        %v1425 = vrot.slane %v1381, 4
        %v1426 = vadd.f32 %v1381, %v1425
        %v1427 = vrot.slane %v1426, 2
        %v1428 = vadd.f32 %v1426, %v1427
        %v1429 = vrot.slane %v1428, 1
        %v1430 = vadd.f32 %v1428, %v1429
        %v1431 = vrot.slane %v1382, 4
        %v1432 = vadd.f32 %v1382, %v1431
        %v1433 = vrot.slane %v1432, 2
        %v1434 = vadd.f32 %v1432, %v1433
        %v1435 = vrot.slane %v1434, 1
        %v1436 = vadd.f32 %v1434, %v1435
        %v1437 = vrot.slane %v1383, 4
        %v1438 = vadd.f32 %v1383, %v1437
        %v1439 = vrot.slane %v1438, 2
        %v1440 = vadd.f32 %v1438, %v1439
        %v1441 = vrot.slane %v1440, 1
        %v1442 = vadd.f32 %v1440, %v1441
        %v1443 = vrot.slane %v1384, 4
        %v1444 = vadd.f32 %v1384, %v1443
        %v1445 = vrot.slane %v1444, 2
        %v1446 = vadd.f32 %v1444, %v1445
        %v1447 = vrot.slane %v1446, 1
        %v1448 = vadd.f32 %v1446, %v1447
        %v1449 = vrot.slane %v1385, 4
        %v1450 = vadd.f32 %v1385, %v1449
        %v1451 = vrot.slane %v1450, 2
        %v1452 = vadd.f32 %v1450, %v1451
        %v1453 = vrot.slane %v1452, 1
        %v1454 = vadd.f32 %v1452, %v1453
        %v1455 = vrot.slane %v1386, 4
        %v1456 = vadd.f32 %v1386, %v1455
        %v1457 = vrot.slane %v1456, 2
        %v1458 = vadd.f32 %v1456, %v1457
        %v1459 = vrot.slane %v1458, 1
        %v1460 = vadd.f32 %v1458, %v1459
        %v1461 = vrot.slane %v1387, 4
        %v1462 = vadd.f32 %v1387, %v1461
        %v1463 = vrot.slane %v1462, 2
        %v1464 = vadd.f32 %v1462, %v1463
        %v1465 = vrot.slane %v1464, 1
        %v1466 = vadd.f32 %v1464, %v1465
        %v1467 = vrot.slane %v1388, 4
        %v1468 = vadd.f32 %v1388, %v1467
        %v1469 = vrot.slane %v1468, 2
        %v1470 = vadd.f32 %v1468, %v1469
        %v1471 = vrot.slane %v1470, 1
        %v1472 = vadd.f32 %v1470, %v1471
        %v1473 = vrot.slane %v1389, 4
        %v1474 = vadd.f32 %v1389, %v1473
        %v1475 = vrot.slane %v1474, 2
        %v1476 = vadd.f32 %v1474, %v1475
        %v1477 = vrot.slane %v1476, 1
        %v1478 = vadd.f32 %v1476, %v1477
        %v1479 = vrot.slane %v1390, 4
        %v1480 = vadd.f32 %v1390, %v1479
        %v1481 = vrot.slane %v1480, 2
        %v1482 = vadd.f32 %v1480, %v1481
        %v1483 = vrot.slane %v1482, 1
        %v1484 = vadd.f32 %v1482, %v1483
        %v1485 = vrot.slane %v1391, 4
        %v1486 = vadd.f32 %v1391, %v1485
        %v1487 = vrot.slane %v1486, 2
        %v1488 = vadd.f32 %v1486, %v1487
        %v1489 = vrot.slane %v1488, 1
        %v1490 = vadd.f32 %v1488, %v1489
        %v1491 = vrot.slane %v1392, 4
        %v1492 = vadd.f32 %v1392, %v1491
        %v1493 = vrot.slane %v1492, 2
        %v1494 = vadd.f32 %v1492, %v1493
        %v1495 = vrot.slane %v1494, 1
        %v1496 = vadd.f32 %v1494, %v1495
        %v1497 = vrot.slane %v1393, 4
        %v1498 = vadd.f32 %v1393, %v1497
        %v1499 = vrot.slane %v1498, 2
        %v1500 = vadd.f32 %v1498, %v1499
        %v1501 = vrot.slane %v1500, 1
        %v1502 = vadd.f32 %v1500, %v1501
        %v1503 = vrot.slane %v1394, 4
        %v1504 = vadd.f32 %v1394, %v1503
        %v1505 = vrot.slane %v1504, 2
        %v1506 = vadd.f32 %v1504, %v1505
        %v1507 = vrot.slane %v1506, 1
        %v1508 = vadd.f32 %v1506, %v1507
        %v1509 = vrot.slane %v1395, 4
        %v1510 = vadd.f32 %v1395, %v1509
        %v1511 = vrot.slane %v1510, 2
        %v1512 = vadd.f32 %v1510, %v1511
        %v1513 = vrot.slane %v1512, 1
        %v1514 = vadd.f32 %v1512, %v1513
        %v1515 = vrot.slane %v1396, 4
        %v1516 = vadd.f32 %v1396, %v1515
        %v1517 = vrot.slane %v1516, 2
        %v1518 = vadd.f32 %v1516, %v1517
        %v1519 = vrot.slane %v1518, 1
        %v1520 = vadd.f32 %v1518, %v1519
        %v1521 = vrot.slane %v1397, 4
        %v1522 = vadd.f32 %v1397, %v1521
        %v1523 = vrot.slane %v1522, 2
        %v1524 = vadd.f32 %v1522, %v1523
        %v1525 = vrot.slane %v1524, 1
        %v1526 = vadd.f32 %v1524, %v1525
        %v1527 = vrot.slane %v1398, 4
        %v1528 = vadd.f32 %v1398, %v1527
        %v1529 = vrot.slane %v1528, 2
        %v1530 = vadd.f32 %v1528, %v1529
        %v1531 = vrot.slane %v1530, 1
        %v1532 = vadd.f32 %v1530, %v1531
        %v1533 = vrot.slane %v1399, 4
        %v1534 = vadd.f32 %v1399, %v1533
        %v1535 = vrot.slane %v1534, 2
        %v1536 = vadd.f32 %v1534, %v1535
        %v1537 = vrot.slane %v1536, 1
        %v1538 = vadd.f32 %v1536, %v1537
        %v1539 = vrot.slane %v1400, 4
        %v1540 = vadd.f32 %v1400, %v1539
        %v1541 = vrot.slane %v1540, 2
        %v1542 = vadd.f32 %v1540, %v1541
        %v1543 = vrot.slane %v1542, 1
        %v1544 = vadd.f32 %v1542, %v1543
        %vm1569 = vcmask 1041409
        %v1570 = vsel %vm1569, %v1418, %v1406
        %vm1571 = vcmask 1042434
        %v1572 = vsel %vm1571, %v1430, %v1570
        %vm1573 = vcmask 1043459
        %v1574 = vsel %vm1573, %v1442, %v1572
        %vm1575 = vcmask 1044484
        %v1576 = vsel %vm1575, %v1454, %v1574
        %vm1577 = vcmask 1045509
        %v1578 = vsel %vm1577, %v1466, %v1576
        %vm1579 = vcmask 1046534
        %v1580 = vsel %vm1579, %v1478, %v1578
        %vm1581 = vcmask 1047559
        %v1582 = vsel %vm1581, %v1490, %v1580
        %v1583 = vsel %vm1569, %v1424, %v1412
        %v1584 = vsel %vm1571, %v1436, %v1583
        %v1585 = vsel %vm1573, %v1448, %v1584
        %v1586 = vsel %vm1575, %v1460, %v1585
        %v1587 = vsel %vm1577, %v1472, %v1586
        %v1588 = vsel %vm1579, %v1484, %v1587
        %v1589 = vsel %vm1581, %v1496, %v1588
        %v1590 = vsel %vm1569, %v1514, %v1502
        %v1591 = vsel %vm1571, %v1526, %v1590
        %v1592 = vsel %vm1573, %v1538, %v1591
        %v1593 = vsel %vm1569, %v1520, %v1508
        %v1594 = vsel %vm1571, %v1532, %v1593
        %v1595 = vsel %vm1573, %v1544, %v1594
        %1600 = vst [vmem:[%s228] sm:$0xff] %v1582
        %1601 = vst [vmem:[%s228 + $0x8] sm:$0xff] %v1589
        %1602 = vst [vmem:[%s228 + $0x10] sm:$0xf] %v1592
        %1603 = vst [vmem:[%s228 + $0x18] sm:$0xf] %v1595
        %s1604 = smul.u32 2, %s23
        %p1605 = scmp.lt.s32.totalorder %s24, 1
        %s1606 = scalar_select %p1605, %s24, 1
        %p1607 = scmp.lt.s32.totalorder %s1604, 1
        %s1608 = scalar_select %p1607, %s1604, 1
        %s1609 = smul.addr %s1606, 4
        %s1610 = sadd.s32 %s1608, %s1609
        %s1611 = smul.addr %s1610, 8
        %s1612 = scalar_lea.vmem %s2, %s1611
        // Predicated region
        $region41: #{tpu_custom_call.1} parent=27 // pred_check
          %p1613 = pneg %p105
        $region42: #{tpu_custom_call.1} parent=27 // pred_check_branch
          %1615 = sbr.rel (%p1613) target = $region44
        $region43: #{tpu_custom_call.1} parent=27 // pred_region
          %s1616 = smul.u32 2, %s23
        $region44: #{tpu_custom_call.1} parent=27 // pred_fallthru
          _
      $region28: #{tpu_custom_call.1} parent=5 // pred_fallthru
        _
      %p1617 = scmp.le.s32.totalorder 2, %s14
      // Predicated region
      $region45: #{tpu_custom_call.1} parent=5 // pred_check
        %p1618 = pneg %p1617
      $region46: #{tpu_custom_call.1} parent=5 // pred_check_branch
        %1620 = sbr.rel (%p1618) target = $region48
      $region47: #{tpu_custom_call.1} parent=5 // pred_region
        %s1621 = ssub.s32 %s14, 2
        // Predicated region
        $region49: #{tpu_custom_call.1} parent=47 // pred_check
          %p1622 = pneg %p111
        $region50: #{tpu_custom_call.1} parent=47 // pred_check_branch
          %1624 = sbr.rel (%p1622) target = $region52
        $region51: #{tpu_custom_call.1} parent=47 // pred_region
          %s1625 = smul.u32 2, %s25
          %p1626 = scmp.lt.s32.totalorder %s26, 1
          %s1627 = scalar_select %p1626, %s26, 1
          %p1628 = scmp.lt.s32.totalorder %s1625, 1
          %s1629 = scalar_select %p1628, %s1625, 1
          %s1630 = smul.addr %s1627, 4
          %s1631 = sadd.s32 %s1629, %s1630
          %s1632 = smul.addr %s1631, 8
          %s1633 = scalar_lea.vmem %s2, %s1632
        $region52: #{tpu_custom_call.1} parent=47 // pred_fallthru
          _
      $region48: #{tpu_custom_call.1} parent=5 // pred_fallthru
        _
    $region6: #{tpu_custom_call.1} parent=1 // loop_footer
      %s18 = sadd.s32 1, %s14
    $region7: #{tpu_custom_call.1} parent=1 // loop_footer_branch
      %13 = sbr.rel target = $region3
    $region8: #{tpu_custom_call.1} parent=1 // loop_exit
      _
    %1634 = vsyncpa [#allocation4], 1
    %s1635 = scalar_lea.sflag [#allocation4], 1
    %1636 = vsyncpa %s1635, 1
    %1637 = vsyncpa [#allocation6], 1
    %s1638 = scalar_lea.sflag [#allocation6], 1
    %1639 = vsyncpa %s1638, 1

</llo_original>
